<compile_context>
chip_gen: v7x
topology: tpu7x:2x2x1
jax: 0.10.0
libtpu: 0.0.40
codegen_flags: <defaults>
</compile_context>

<pallas_src>
import jax
import jax.numpy as jnp
from jax.experimental import pallas as pl
from jax.experimental.pallas import tpu as pltpu


def _embedding_gather_kernel(ids_ref, table_ref, out_ref):
    """One grid step gathers a block of embedding rows, packed lane-dense.

    ids_ref   : (BR, 128) int32 -- token id of every output element (each id
                replicated D times along the lane axis by the wrapper).
    table_ref : (V, 128) f32    -- embedding table, each row tiled 128//D times
                along lanes so it lines up with the packed output layout.
    out_ref   : (BR, 128) f32   -- packed output tile; flat row-major it equals
                the (token_block, D) gather result.
    """
    ids = ids_ref[...]                                  # (BR, 128) int32
    vocab = table_ref.shape[0]

    # Exact gather as an unrolled compare/select scan over the vocab:
    #   acc[r, l] += (ids[r, l] == v) ? table[v, l] : 0.0
    # Exactly one v matches per element (ids are pre-clipped to [0, V)), and the
    # other terms add exact zeros, so acc is bit-identical to table[id].
    # Per iteration: 1 static-offset vld + compare/select/add on BR/8 vregs; the
    # accumulator stays resident in vregs (no big 3-D temporaries, no spills).
    acc = jnp.zeros(ids.shape, dtype=jnp.float32)
    for v in range(vocab):                              # static unroll; V is small
        row = table_ref[v, :]                           # (128,) f32
        acc = acc + jnp.where(ids == v, row, 0.0)       # sublane-broadcast select
    out_ref[...] = acc


def distilled_embedding_forward(x, table, *, max_token_block=256):
    """x: [B, S] integer token ids; table: [V, D] float32. Returns [B, S, D]."""
    B, S = x.shape
    V, D = table.shape
    assert 128 % D == 0, "packed-lane kernel assumes the embedding dim divides 128"
    assert V <= 1024, "resident-table kernel: vocab must stay small (see TODO)"

    pack = 128 // D                 # tokens packed per 128-lane output row
    tok_gran = 8 * pack             # tokens per 8 output rows = min (8,128) block

    N = B * S
    # Adaptive block: big tiles for big inputs, minimal aligned tile for tiny ones.
    granules_per_block = min(pl.cdiv(N, tok_gran), max(1, max_token_block // tok_gran))
    token_block = granules_per_block * tok_gran
    block_rows = token_block * D // 128                 # multiple of 8 by construction

    n_pad = pl.cdiv(N, token_block) * token_block
    rows_total = n_pad * D // 128

    # Clip (OOB-safe gather; PyTorch would raise, we clamp) and pad with id 0.
    ids = jnp.clip(x.reshape(-1).astype(jnp.int32), 0, V - 1)
    ids = jnp.pad(ids, (0, n_pad - N))

    # Lane-dense packing: flat row-major (n_pad, D) == (n_pad*D/128, 128).
    # ids_lanes[r, c] = ids[(128*r + c) // D]  (each id repeated D times).
    ids_lanes = jnp.repeat(ids, D).reshape(rows_total, 128)
    # table_lanes[v, j*D + d] = table[v, d]  (row tiled to the packed layout).
    table_lanes = jnp.tile(table.astype(jnp.float32), (1, pack))      # (V, 128)

    grid = (n_pad // token_block,)
    out_packed = pl.pallas_call(
        _embedding_gather_kernel,
        out_shape=jax.ShapeDtypeStruct((rows_total, 128), jnp.float32),
        grid_spec=pltpu.PrefetchScalarGridSpec(
            num_scalar_prefetch=0,
            grid=grid,
            in_specs=[
                # Per-step block of lane-replicated ids (regular VMEM input).
                pl.BlockSpec((block_rows, 128), lambda i: (i, 0)),
                # Full embedding table resident in VMEM (constant block index ->
                # fetched once, not re-DMA'd every step).
                pl.BlockSpec((V, 128), lambda i: (0, 0)),
            ],
            out_specs=pl.BlockSpec((block_rows, 128), lambda i: (i, 0)),
        ),
        compiler_params=pltpu.CompilerParams(
            dimension_semantics=("parallel",),      # disjoint tiles -> 2 TCs on v7x
            vmem_limit_bytes=32 * 1024 * 1024,
        ),
    )(ids_lanes, table_lanes)

    # Free (metadata-only) unpack back to PyTorch layout, drop padding tokens.
    return out_packed.reshape(n_pad, D)[:N].reshape(B, S, D)


def make_embedding_table(key, vocab_size, distil_dim, padding_idx):
    # Mirrors the `pretrained_embeddings is None` branch:
    #   torch.rand(len(distil_vocab), distil_dim)  -> uniform [0, 1)
    # nn.Embedding.from_pretrained keeps the provided weights unchanged
    # (padding_idx only affects gradients), so no row is zeroed.
    # TODO(synk): the IncrementalPCA teacher-embedding projection branch is
    # init-time preprocessing, not part of forward, so it is not implemented here.
    del padding_idx
    return jax.random.uniform(key, (vocab_size, distil_dim), dtype=jnp.float32)


if __name__ == "__main__":
    key = jax.random.PRNGKey(0)
    k_tab, k_ids = jax.random.split(key)

    # Small synthetic config consistent with the module's forward:
    vocab_size = 64      # len(distil_vocab)
    distil_dim = 32      # student embedding dim
    padding_idx = 0
    B, S = 2, 8          # batch of token-id sequences

    table = make_embedding_table(k_tab, vocab_size, distil_dim, padding_idx)
    x = jax.random.randint(k_ids, (B, S), 0, vocab_size, dtype=jnp.int32)

    out = distilled_embedding_forward(x, table)
    out = jax.block_until_ready(out)

    # Reference check (plain JAX gather) to make sure semantics match exactly.
    ref = table[x]
    assert out.shape == (B, S, distil_dim)
    assert jnp.array_equal(out, ref), "Pallas embedding gather mismatch"

    print("KERNEL_OK")
</pallas_src>

<mosaic_0001>
module attributes {stable_mosaic.version = 11 : i64} {
  func.func @_embedding_gather_kernel(%arg0: i32, %arg1: memref<8x128xi32, #tpu.memory_space<vmem>>, %arg2: memref<64x128xf32, #tpu.memory_space<vmem>>, %arg3: memref<8x128xf32, #tpu.memory_space<vmem>>) attributes {dimension_semantics = [#tpu.dimension_semantics<parallel>], iteration_bounds = array<i64: 1>, scalar_prefetch = 0 : i64, scratch_operands = 0 : i64, tpu.core_type = #tpu.core_type<tc>, window_params = [{transform_indices = @transform_0, window_bounds = array<i64: 8, 128>}, {pipeline_mode = #tpu.pipeline_mode<synchronous>, transform_indices = @transform_1, window_bounds = array<i64: 64, 128>}, {transform_indices = @transform_2, window_bounds = array<i64: 8, 128>}]} {
    %c0 = arith.constant 0 : index
    %c0_0 = arith.constant 0 : index
    %0 = vector.load %arg1[%c0, %c0_0] : memref<8x128xi32, #tpu.memory_space<vmem>>, vector<8x128xi32>
    %cst = arith.constant 0.000000e+00 : f32
    %1 = vector.broadcast %cst : f32 to vector<8x128xf32>
    %c0_1 = arith.constant 0 : index
    %c0_2 = arith.constant 0 : index
    %2 = vector.load %arg2[%c0_1, %c0_2] : memref<64x128xf32, #tpu.memory_space<vmem>>, vector<1x128xf32>
    %3 = vector.shape_cast %2 : vector<1x128xf32> to vector<128xf32>
    %c0_i32 = arith.constant 0 : i32
    %4 = vector.broadcast %c0_i32 : i32 to vector<8x128xi32>
    %5 = arith.cmpi eq, %0, %4 : vector<8x128xi32>
    %cst_3 = arith.constant 0.000000e+00 : f32
    %6 = vector.shape_cast %3 : vector<128xf32> to vector<1x128xf32>
    %7 = vector.broadcast %6 : vector<1x128xf32> to vector<8x128xf32>
    %8 = vector.broadcast %cst_3 : f32 to vector<8x128xf32>
    %9 = arith.select %5, %7, %8 : vector<8x128xi1>, vector<8x128xf32>
    %10 = arith.addf %1, %9 : vector<8x128xf32>
    %c1 = arith.constant 1 : index
    %c0_4 = arith.constant 0 : index
    %11 = vector.load %arg2[%c1, %c0_4] : memref<64x128xf32, #tpu.memory_space<vmem>>, vector<1x128xf32>
    %12 = vector.shape_cast %11 : vector<1x128xf32> to vector<128xf32>
    %c1_i32 = arith.constant 1 : i32
    %13 = vector.broadcast %c1_i32 : i32 to vector<8x128xi32>
    %14 = arith.cmpi eq, %0, %13 : vector<8x128xi32>
    %cst_5 = arith.constant 0.000000e+00 : f32
    %15 = vector.shape_cast %12 : vector<128xf32> to vector<1x128xf32>
    %16 = vector.broadcast %15 : vector<1x128xf32> to vector<8x128xf32>
    %17 = vector.broadcast %cst_5 : f32 to vector<8x128xf32>
    %18 = arith.select %14, %16, %17 : vector<8x128xi1>, vector<8x128xf32>
    %19 = arith.addf %10, %18 : vector<8x128xf32>
    %c2 = arith.constant 2 : index
    %c0_6 = arith.constant 0 : index
    %20 = vector.load %arg2[%c2, %c0_6] : memref<64x128xf32, #tpu.memory_space<vmem>>, vector<1x128xf32>
    %21 = vector.shape_cast %20 : vector<1x128xf32> to vector<128xf32>
    %c2_i32 = arith.constant 2 : i32
    %22 = vector.broadcast %c2_i32 : i32 to vector<8x128xi32>
    %23 = arith.cmpi eq, %0, %22 : vector<8x128xi32>
    %cst_7 = arith.constant 0.000000e+00 : f32
    %24 = vector.shape_cast %21 : vector<128xf32> to vector<1x128xf32>
    %25 = vector.broadcast %24 : vector<1x128xf32> to vector<8x128xf32>
    %26 = vector.broadcast %cst_7 : f32 to vector<8x128xf32>
    %27 = arith.select %23, %25, %26 : vector<8x128xi1>, vector<8x128xf32>
    %28 = arith.addf %19, %27 : vector<8x128xf32>
    %c3 = arith.constant 3 : index
    %c0_8 = arith.constant 0 : index
    %29 = vector.load %arg2[%c3, %c0_8] : memref<64x128xf32, #tpu.memory_space<vmem>>, vector<1x128xf32>
    %30 = vector.shape_cast %29 : vector<1x128xf32> to vector<128xf32>
    %c3_i32 = arith.constant 3 : i32
    %31 = vector.broadcast %c3_i32 : i32 to vector<8x128xi32>
    %32 = arith.cmpi eq, %0, %31 : vector<8x128xi32>
    %cst_9 = arith.constant 0.000000e+00 : f32
    %33 = vector.shape_cast %30 : vector<128xf32> to vector<1x128xf32>
    %34 = vector.broadcast %33 : vector<1x128xf32> to vector<8x128xf32>
    %35 = vector.broadcast %cst_9 : f32 to vector<8x128xf32>
    %36 = arith.select %32, %34, %35 : vector<8x128xi1>, vector<8x128xf32>
    %37 = arith.addf %28, %36 : vector<8x128xf32>
    %c4 = arith.constant 4 : index
    %c0_10 = arith.constant 0 : index
    %38 = vector.load %arg2[%c4, %c0_10] : memref<64x128xf32, #tpu.memory_space<vmem>>, vector<1x128xf32>
    %39 = vector.shape_cast %38 : vector<1x128xf32> to vector<128xf32>
    %c4_i32 = arith.constant 4 : i32
    %40 = vector.broadcast %c4_i32 : i32 to vector<8x128xi32>
    %41 = arith.cmpi eq, %0, %40 : vector<8x128xi32>
    %cst_11 = arith.constant 0.000000e+00 : f32
    %42 = vector.shape_cast %39 : vector<128xf32> to vector<1x128xf32>
    %43 = vector.broadcast %42 : vector<1x128xf32> to vector<8x128xf32>
    %44 = vector.broadcast %cst_11 : f32 to vector<8x128xf32>
    %45 = arith.select %41, %43, %44 : vector<8x128xi1>, vector<8x128xf32>
    %46 = arith.addf %37, %45 : vector<8x128xf32>
    %c5 = arith.constant 5 : index
    %c0_12 = arith.constant 0 : index
    %47 = vector.load %arg2[%c5, %c0_12] : memref<64x128xf32, #tpu.memory_space<vmem>>, vector<1x128xf32>
    %48 = vector.shape_cast %47 : vector<1x128xf32> to vector<128xf32>
    %c5_i32 = arith.constant 5 : i32
    %49 = vector.broadcast %c5_i32 : i32 to vector<8x128xi32>
    %50 = arith.cmpi eq, %0, %49 : vector<8x128xi32>
    %cst_13 = arith.constant 0.000000e+00 : f32
    %51 = vector.shape_cast %48 : vector<128xf32> to vector<1x128xf32>
    %52 = vector.broadcast %51 : vector<1x128xf32> to vector<8x128xf32>
    %53 = vector.broadcast %cst_13 : f32 to vector<8x128xf32>
    %54 = arith.select %50, %52, %53 : vector<8x128xi1>, vector<8x128xf32>
    %55 = arith.addf %46, %54 : vector<8x128xf32>
    %c6 = arith.constant 6 : index
    %c0_14 = arith.constant 0 : index
    %56 = vector.load %arg2[%c6, %c0_14] : memref<64x128xf32, #tpu.memory_space<vmem>>, vector<1x128xf32>
    %57 = vector.shape_cast %56 : vector<1x128xf32> to vector<128xf32>
    %c6_i32 = arith.constant 6 : i32
    %58 = vector.broadcast %c6_i32 : i32 to vector<8x128xi32>
    %59 = arith.cmpi eq, %0, %58 : vector<8x128xi32>
    %cst_15 = arith.constant 0.000000e+00 : f32
    %60 = vector.shape_cast %57 : vector<128xf32> to vector<1x128xf32>
    %61 = vector.broadcast %60 : vector<1x128xf32> to vector<8x128xf32>
    %62 = vector.broadcast %cst_15 : f32 to vector<8x128xf32>
    %63 = arith.select %59, %61, %62 : vector<8x128xi1>, vector<8x128xf32>
    %64 = arith.addf %55, %63 : vector<8x128xf32>
    %c7 = arith.constant 7 : index
    %c0_16 = arith.constant 0 : index
    %65 = vector.load %arg2[%c7, %c0_16] : memref<64x128xf32, #tpu.memory_space<vmem>>, vector<1x128xf32>
    %66 = vector.shape_cast %65 : vector<1x128xf32> to vector<128xf32>
    %c7_i32 = arith.constant 7 : i32
    %67 = vector.broadcast %c7_i32 : i32 to vector<8x128xi32>
    %68 = arith.cmpi eq, %0, %67 : vector<8x128xi32>
    %cst_17 = arith.constant 0.000000e+00 : f32
    %69 = vector.shape_cast %66 : vector<128xf32> to vector<1x128xf32>
    %70 = vector.broadcast %69 : vector<1x128xf32> to vector<8x128xf32>
    %71 = vector.broadcast %cst_17 : f32 to vector<8x128xf32>
    %72 = arith.select %68, %70, %71 : vector<8x128xi1>, vector<8x128xf32>
    %73 = arith.addf %64, %72 : vector<8x128xf32>
    %c8 = arith.constant 8 : index
    %c0_18 = arith.constant 0 : index
    %74 = vector.load %arg2[%c8, %c0_18] : memref<64x128xf32, #tpu.memory_space<vmem>>, vector<1x128xf32>
    %75 = vector.shape_cast %74 : vector<1x128xf32> to vector<128xf32>
    %c8_i32 = arith.constant 8 : i32
    %76 = vector.broadcast %c8_i32 : i32 to vector<8x128xi32>
    %77 = arith.cmpi eq, %0, %76 : vector<8x128xi32>
    %cst_19 = arith.constant 0.000000e+00 : f32
    %78 = vector.shape_cast %75 : vector<128xf32> to vector<1x128xf32>
    %79 = vector.broadcast %78 : vector<1x128xf32> to vector<8x128xf32>
    %80 = vector.broadcast %cst_19 : f32 to vector<8x128xf32>
    %81 = arith.select %77, %79, %80 : vector<8x128xi1>, vector<8x128xf32>
    %82 = arith.addf %73, %81 : vector<8x128xf32>
    %c9 = arith.constant 9 : index
    %c0_20 = arith.constant 0 : index
    %83 = vector.load %arg2[%c9, %c0_20] : memref<64x128xf32, #tpu.memory_space<vmem>>, vector<1x128xf32>
    %84 = vector.shape_cast %83 : vector<1x128xf32> to vector<128xf32>
    %c9_i32 = arith.constant 9 : i32
    %85 = vector.broadcast %c9_i32 : i32 to vector<8x128xi32>
    %86 = arith.cmpi eq, %0, %85 : vector<8x128xi32>
    %cst_21 = arith.constant 0.000000e+00 : f32
    %87 = vector.shape_cast %84 : vector<128xf32> to vector<1x128xf32>
    %88 = vector.broadcast %87 : vector<1x128xf32> to vector<8x128xf32>
    %89 = vector.broadcast %cst_21 : f32 to vector<8x128xf32>
    %90 = arith.select %86, %88, %89 : vector<8x128xi1>, vector<8x128xf32>
    %91 = arith.addf %82, %90 : vector<8x128xf32>
    %c10 = arith.constant 10 : index
    %c0_22 = arith.constant 0 : index
    %92 = vector.load %arg2[%c10, %c0_22] : memref<64x128xf32, #tpu.memory_space<vmem>>, vector<1x128xf32>
    %93 = vector.shape_cast %92 : vector<1x128xf32> to vector<128xf32>
    %c10_i32 = arith.constant 10 : i32
    %94 = vector.broadcast %c10_i32 : i32 to vector<8x128xi32>
    %95 = arith.cmpi eq, %0, %94 : vector<8x128xi32>
    %cst_23 = arith.constant 0.000000e+00 : f32
    %96 = vector.shape_cast %93 : vector<128xf32> to vector<1x128xf32>
    %97 = vector.broadcast %96 : vector<1x128xf32> to vector<8x128xf32>
    %98 = vector.broadcast %cst_23 : f32 to vector<8x128xf32>
    %99 = arith.select %95, %97, %98 : vector<8x128xi1>, vector<8x128xf32>
    %100 = arith.addf %91, %99 : vector<8x128xf32>
    %c11 = arith.constant 11 : index
    %c0_24 = arith.constant 0 : index
    %101 = vector.load %arg2[%c11, %c0_24] : memref<64x128xf32, #tpu.memory_space<vmem>>, vector<1x128xf32>
    %102 = vector.shape_cast %101 : vector<1x128xf32> to vector<128xf32>
    %c11_i32 = arith.constant 11 : i32
    %103 = vector.broadcast %c11_i32 : i32 to vector<8x128xi32>
    %104 = arith.cmpi eq, %0, %103 : vector<8x128xi32>
    %cst_25 = arith.constant 0.000000e+00 : f32
    %105 = vector.shape_cast %102 : vector<128xf32> to vector<1x128xf32>
    %106 = vector.broadcast %105 : vector<1x128xf32> to vector<8x128xf32>
    %107 = vector.broadcast %cst_25 : f32 to vector<8x128xf32>
    %108 = arith.select %104, %106, %107 : vector<8x128xi1>, vector<8x128xf32>
    %109 = arith.addf %100, %108 : vector<8x128xf32>
    %c12 = arith.constant 12 : index
    %c0_26 = arith.constant 0 : index
    %110 = vector.load %arg2[%c12, %c0_26] : memref<64x128xf32, #tpu.memory_space<vmem>>, vector<1x128xf32>
    %111 = vector.shape_cast %110 : vector<1x128xf32> to vector<128xf32>
    %c12_i32 = arith.constant 12 : i32
    %112 = vector.broadcast %c12_i32 : i32 to vector<8x128xi32>
    %113 = arith.cmpi eq, %0, %112 : vector<8x128xi32>
    %cst_27 = arith.constant 0.000000e+00 : f32
    %114 = vector.shape_cast %111 : vector<128xf32> to vector<1x128xf32>
    %115 = vector.broadcast %114 : vector<1x128xf32> to vector<8x128xf32>
    %116 = vector.broadcast %cst_27 : f32 to vector<8x128xf32>
    %117 = arith.select %113, %115, %116 : vector<8x128xi1>, vector<8x128xf32>
    %118 = arith.addf %109, %117 : vector<8x128xf32>
    %c13 = arith.constant 13 : index
    %c0_28 = arith.constant 0 : index
    %119 = vector.load %arg2[%c13, %c0_28] : memref<64x128xf32, #tpu.memory_space<vmem>>, vector<1x128xf32>
    %120 = vector.shape_cast %119 : vector<1x128xf32> to vector<128xf32>
    %c13_i32 = arith.constant 13 : i32
    %121 = vector.broadcast %c13_i32 : i32 to vector<8x128xi32>
    %122 = arith.cmpi eq, %0, %121 : vector<8x128xi32>
    %cst_29 = arith.constant 0.000000e+00 : f32
    %123 = vector.shape_cast %120 : vector<128xf32> to vector<1x128xf32>
    %124 = vector.broadcast %123 : vector<1x128xf32> to vector<8x128xf32>
    %125 = vector.broadcast %cst_29 : f32 to vector<8x128xf32>
    %126 = arith.select %122, %124, %125 : vector<8x128xi1>, vector<8x128xf32>
    %127 = arith.addf %118, %126 : vector<8x128xf32>
    %c14 = arith.constant 14 : index
    %c0_30 = arith.constant 0 : index
    %128 = vector.load %arg2[%c14, %c0_30] : memref<64x128xf32, #tpu.memory_space<vmem>>, vector<1x128xf32>
    %129 = vector.shape_cast %128 : vector<1x128xf32> to vector<128xf32>
    %c14_i32 = arith.constant 14 : i32
    %130 = vector.broadcast %c14_i32 : i32 to vector<8x128xi32>
    %131 = arith.cmpi eq, %0, %130 : vector<8x128xi32>
    %cst_31 = arith.constant 0.000000e+00 : f32
    %132 = vector.shape_cast %129 : vector<128xf32> to vector<1x128xf32>
    %133 = vector.broadcast %132 : vector<1x128xf32> to vector<8x128xf32>
    %134 = vector.broadcast %cst_31 : f32 to vector<8x128xf32>
    %135 = arith.select %131, %133, %134 : vector<8x128xi1>, vector<8x128xf32>
    %136 = arith.addf %127, %135 : vector<8x128xf32>
    %c15 = arith.constant 15 : index
    %c0_32 = arith.constant 0 : index
    %137 = vector.load %arg2[%c15, %c0_32] : memref<64x128xf32, #tpu.memory_space<vmem>>, vector<1x128xf32>
    %138 = vector.shape_cast %137 : vector<1x128xf32> to vector<128xf32>
    %c15_i32 = arith.constant 15 : i32
    %139 = vector.broadcast %c15_i32 : i32 to vector<8x128xi32>
    %140 = arith.cmpi eq, %0, %139 : vector<8x128xi32>
    %cst_33 = arith.constant 0.000000e+00 : f32
    %141 = vector.shape_cast %138 : vector<128xf32> to vector<1x128xf32>
    %142 = vector.broadcast %141 : vector<1x128xf32> to vector<8x128xf32>
    %143 = vector.broadcast %cst_33 : f32 to vector<8x128xf32>
    %144 = arith.select %140, %142, %143 : vector<8x128xi1>, vector<8x128xf32>
    %145 = arith.addf %136, %144 : vector<8x128xf32>
    %c16 = arith.constant 16 : index
    %c0_34 = arith.constant 0 : index
    %146 = vector.load %arg2[%c16, %c0_34] : memref<64x128xf32, #tpu.memory_space<vmem>>, vector<1x128xf32>
    %147 = vector.shape_cast %146 : vector<1x128xf32> to vector<128xf32>
    %c16_i32 = arith.constant 16 : i32
    %148 = vector.broadcast %c16_i32 : i32 to vector<8x128xi32>
    %149 = arith.cmpi eq, %0, %148 : vector<8x128xi32>
    %cst_35 = arith.constant 0.000000e+00 : f32
    %150 = vector.shape_cast %147 : vector<128xf32> to vector<1x128xf32>
    %151 = vector.broadcast %150 : vector<1x128xf32> to vector<8x128xf32>
    %152 = vector.broadcast %cst_35 : f32 to vector<8x128xf32>
    %153 = arith.select %149, %151, %152 : vector<8x128xi1>, vector<8x128xf32>
    %154 = arith.addf %145, %153 : vector<8x128xf32>
    %c17 = arith.constant 17 : index
    %c0_36 = arith.constant 0 : index
    %155 = vector.load %arg2[%c17, %c0_36] : memref<64x128xf32, #tpu.memory_space<vmem>>, vector<1x128xf32>
    %156 = vector.shape_cast %155 : vector<1x128xf32> to vector<128xf32>
    %c17_i32 = arith.constant 17 : i32
    %157 = vector.broadcast %c17_i32 : i32 to vector<8x128xi32>
    %158 = arith.cmpi eq, %0, %157 : vector<8x128xi32>
    %cst_37 = arith.constant 0.000000e+00 : f32
    %159 = vector.shape_cast %156 : vector<128xf32> to vector<1x128xf32>
    %160 = vector.broadcast %159 : vector<1x128xf32> to vector<8x128xf32>
    %161 = vector.broadcast %cst_37 : f32 to vector<8x128xf32>
    %162 = arith.select %158, %160, %161 : vector<8x128xi1>, vector<8x128xf32>
    %163 = arith.addf %154, %162 : vector<8x128xf32>
    %c18 = arith.constant 18 : index
    %c0_38 = arith.constant 0 : index
    %164 = vector.load %arg2[%c18, %c0_38] : memref<64x128xf32, #tpu.memory_space<vmem>>, vector<1x128xf32>
    %165 = vector.shape_cast %164 : vector<1x128xf32> to vector<128xf32>
    %c18_i32 = arith.constant 18 : i32
    %166 = vector.broadcast %c18_i32 : i32 to vector<8x128xi32>
    %167 = arith.cmpi eq, %0, %166 : vector<8x128xi32>
    %cst_39 = arith.constant 0.000000e+00 : f32
    %168 = vector.shape_cast %165 : vector<128xf32> to vector<1x128xf32>
    %169 = vector.broadcast %168 : vector<1x128xf32> to vector<8x128xf32>
    %170 = vector.broadcast %cst_39 : f32 to vector<8x128xf32>
    %171 = arith.select %167, %169, %170 : vector<8x128xi1>, vector<8x128xf32>
    %172 = arith.addf %163, %171 : vector<8x128xf32>
    %c19 = arith.constant 19 : index
    %c0_40 = arith.constant 0 : index
    %173 = vector.load %arg2[%c19, %c0_40] : memref<64x128xf32, #tpu.memory_space<vmem>>, vector<1x128xf32>
    %174 = vector.shape_cast %173 : vector<1x128xf32> to vector<128xf32>
    %c19_i32 = arith.constant 19 : i32
    %175 = vector.broadcast %c19_i32 : i32 to vector<8x128xi32>
    %176 = arith.cmpi eq, %0, %175 : vector<8x128xi32>
    %cst_41 = arith.constant 0.000000e+00 : f32
    %177 = vector.shape_cast %174 : vector<128xf32> to vector<1x128xf32>
    %178 = vector.broadcast %177 : vector<1x128xf32> to vector<8x128xf32>
    %179 = vector.broadcast %cst_41 : f32 to vector<8x128xf32>
    %180 = arith.select %176, %178, %179 : vector<8x128xi1>, vector<8x128xf32>
    %181 = arith.addf %172, %180 : vector<8x128xf32>
    %c20 = arith.constant 20 : index
    %c0_42 = arith.constant 0 : index
    %182 = vector.load %arg2[%c20, %c0_42] : memref<64x128xf32, #tpu.memory_space<vmem>>, vector<1x128xf32>
    %183 = vector.shape_cast %182 : vector<1x128xf32> to vector<128xf32>
    %c20_i32 = arith.constant 20 : i32
    %184 = vector.broadcast %c20_i32 : i32 to vector<8x128xi32>
    %185 = arith.cmpi eq, %0, %184 : vector<8x128xi32>
    %cst_43 = arith.constant 0.000000e+00 : f32
    %186 = vector.shape_cast %183 : vector<128xf32> to vector<1x128xf32>
    %187 = vector.broadcast %186 : vector<1x128xf32> to vector<8x128xf32>
    %188 = vector.broadcast %cst_43 : f32 to vector<8x128xf32>
    %189 = arith.select %185, %187, %188 : vector<8x128xi1>, vector<8x128xf32>
    %190 = arith.addf %181, %189 : vector<8x128xf32>
    %c21 = arith.constant 21 : index
    %c0_44 = arith.constant 0 : index
    %191 = vector.load %arg2[%c21, %c0_44] : memref<64x128xf32, #tpu.memory_space<vmem>>, vector<1x128xf32>
    %192 = vector.shape_cast %191 : vector<1x128xf32> to vector<128xf32>
    %c21_i32 = arith.constant 21 : i32
    %193 = vector.broadcast %c21_i32 : i32 to vector<8x128xi32>
    %194 = arith.cmpi eq, %0, %193 : vector<8x128xi32>
    %cst_45 = arith.constant 0.000000e+00 : f32
    %195 = vector.shape_cast %192 : vector<128xf32> to vector<1x128xf32>
    %196 = vector.broadcast %195 : vector<1x128xf32> to vector<8x128xf32>
    %197 = vector.broadcast %cst_45 : f32 to vector<8x128xf32>
    %198 = arith.select %194, %196, %197 : vector<8x128xi1>, vector<8x128xf32>
    %199 = arith.addf %190, %198 : vector<8x128xf32>
    %c22 = arith.constant 22 : index
    %c0_46 = arith.constant 0 : index
    %200 = vector.load %arg2[%c22, %c0_46] : memref<64x128xf32, #tpu.memory_space<vmem>>, vector<1x128xf32>
    %201 = vector.shape_cast %200 : vector<1x128xf32> to vector<128xf32>
    %c22_i32 = arith.constant 22 : i32
    %202 = vector.broadcast %c22_i32 : i32 to vector<8x128xi32>
    %203 = arith.cmpi eq, %0, %202 : vector<8x128xi32>
    %cst_47 = arith.constant 0.000000e+00 : f32
    %204 = vector.shape_cast %201 : vector<128xf32> to vector<1x128xf32>
    %205 = vector.broadcast %204 : vector<1x128xf32> to vector<8x128xf32>
    %206 = vector.broadcast %cst_47 : f32 to vector<8x128xf32>
    %207 = arith.select %203, %205, %206 : vector<8x128xi1>, vector<8x128xf32>
    %208 = arith.addf %199, %207 : vector<8x128xf32>
    %c23 = arith.constant 23 : index
    %c0_48 = arith.constant 0 : index
    %209 = vector.load %arg2[%c23, %c0_48] : memref<64x128xf32, #tpu.memory_space<vmem>>, vector<1x128xf32>
    %210 = vector.shape_cast %209 : vector<1x128xf32> to vector<128xf32>
    %c23_i32 = arith.constant 23 : i32
    %211 = vector.broadcast %c23_i32 : i32 to vector<8x128xi32>
    %212 = arith.cmpi eq, %0, %211 : vector<8x128xi32>
    %cst_49 = arith.constant 0.000000e+00 : f32
    %213 = vector.shape_cast %210 : vector<128xf32> to vector<1x128xf32>
    %214 = vector.broadcast %213 : vector<1x128xf32> to vector<8x128xf32>
    %215 = vector.broadcast %cst_49 : f32 to vector<8x128xf32>
    %216 = arith.select %212, %214, %215 : vector<8x128xi1>, vector<8x128xf32>
    %217 = arith.addf %208, %216 : vector<8x128xf32>
    %c24 = arith.constant 24 : index
    %c0_50 = arith.constant 0 : index
    %218 = vector.load %arg2[%c24, %c0_50] : memref<64x128xf32, #tpu.memory_space<vmem>>, vector<1x128xf32>
    %219 = vector.shape_cast %218 : vector<1x128xf32> to vector<128xf32>
    %c24_i32 = arith.constant 24 : i32
    %220 = vector.broadcast %c24_i32 : i32 to vector<8x128xi32>
    %221 = arith.cmpi eq, %0, %220 : vector<8x128xi32>
    %cst_51 = arith.constant 0.000000e+00 : f32
    %222 = vector.shape_cast %219 : vector<128xf32> to vector<1x128xf32>
    %223 = vector.broadcast %222 : vector<1x128xf32> to vector<8x128xf32>
    %224 = vector.broadcast %cst_51 : f32 to vector<8x128xf32>
    %225 = arith.select %221, %223, %224 : vector<8x128xi1>, vector<8x128xf32>
    %226 = arith.addf %217, %225 : vector<8x128xf32>
    %c25 = arith.constant 25 : index
    %c0_52 = arith.constant 0 : index
    %227 = vector.load %arg2[%c25, %c0_52] : memref<64x128xf32, #tpu.memory_space<vmem>>, vector<1x128xf32>
    %228 = vector.shape_cast %227 : vector<1x128xf32> to vector<128xf32>
    %c25_i32 = arith.constant 25 : i32
    %229 = vector.broadcast %c25_i32 : i32 to vector<8x128xi32>
    %230 = arith.cmpi eq, %0, %229 : vector<8x128xi32>
    %cst_53 = arith.constant 0.000000e+00 : f32
    %231 = vector.shape_cast %228 : vector<128xf32> to vector<1x128xf32>
    %232 = vector.broadcast %231 : vector<1x128xf32> to vector<8x128xf32>
    %233 = vector.broadcast %cst_53 : f32 to vector<8x128xf32>
    %234 = arith.select %230, %232, %233 : vector<8x128xi1>, vector<8x128xf32>
    %235 = arith.addf %226, %234 : vector<8x128xf32>
    %c26 = arith.constant 26 : index
    %c0_54 = arith.constant 0 : index
    %236 = vector.load %arg2[%c26, %c0_54] : memref<64x128xf32, #tpu.memory_space<vmem>>, vector<1x128xf32>
    %237 = vector.shape_cast %236 : vector<1x128xf32> to vector<128xf32>
    %c26_i32 = arith.constant 26 : i32
    %238 = vector.broadcast %c26_i32 : i32 to vector<8x128xi32>
    %239 = arith.cmpi eq, %0, %238 : vector<8x128xi32>
    %cst_55 = arith.constant 0.000000e+00 : f32
    %240 = vector.shape_cast %237 : vector<128xf32> to vector<1x128xf32>
    %241 = vector.broadcast %240 : vector<1x128xf32> to vector<8x128xf32>
    %242 = vector.broadcast %cst_55 : f32 to vector<8x128xf32>
    %243 = arith.select %239, %241, %242 : vector<8x128xi1>, vector<8x128xf32>
    %244 = arith.addf %235, %243 : vector<8x128xf32>
    %c27 = arith.constant 27 : index
    %c0_56 = arith.constant 0 : index
    %245 = vector.load %arg2[%c27, %c0_56] : memref<64x128xf32, #tpu.memory_space<vmem>>, vector<1x128xf32>
    %246 = vector.shape_cast %245 : vector<1x128xf32> to vector<128xf32>
    %c27_i32 = arith.constant 27 : i32
    %247 = vector.broadcast %c27_i32 : i32 to vector<8x128xi32>
    %248 = arith.cmpi eq, %0, %247 : vector<8x128xi32>
    %cst_57 = arith.constant 0.000000e+00 : f32
    %249 = vector.shape_cast %246 : vector<128xf32> to vector<1x128xf32>
    %250 = vector.broadcast %249 : vector<1x128xf32> to vector<8x128xf32>
    %251 = vector.broadcast %cst_57 : f32 to vector<8x128xf32>
    %252 = arith.select %248, %250, %251 : vector<8x128xi1>, vector<8x128xf32>
    %253 = arith.addf %244, %252 : vector<8x128xf32>
    %c28 = arith.constant 28 : index
    %c0_58 = arith.constant 0 : index
    %254 = vector.load %arg2[%c28, %c0_58] : memref<64x128xf32, #tpu.memory_space<vmem>>, vector<1x128xf32>
    %255 = vector.shape_cast %254 : vector<1x128xf32> to vector<128xf32>
    %c28_i32 = arith.constant 28 : i32
    %256 = vector.broadcast %c28_i32 : i32 to vector<8x128xi32>
    %257 = arith.cmpi eq, %0, %256 : vector<8x128xi32>
    %cst_59 = arith.constant 0.000000e+00 : f32
    %258 = vector.shape_cast %255 : vector<128xf32> to vector<1x128xf32>
    %259 = vector.broadcast %258 : vector<1x128xf32> to vector<8x128xf32>
    %260 = vector.broadcast %cst_59 : f32 to vector<8x128xf32>
    %261 = arith.select %257, %259, %260 : vector<8x128xi1>, vector<8x128xf32>
    %262 = arith.addf %253, %261 : vector<8x128xf32>
    %c29 = arith.constant 29 : index
    %c0_60 = arith.constant 0 : index
    %263 = vector.load %arg2[%c29, %c0_60] : memref<64x128xf32, #tpu.memory_space<vmem>>, vector<1x128xf32>
    %264 = vector.shape_cast %263 : vector<1x128xf32> to vector<128xf32>
    %c29_i32 = arith.constant 29 : i32
    %265 = vector.broadcast %c29_i32 : i32 to vector<8x128xi32>
    %266 = arith.cmpi eq, %0, %265 : vector<8x128xi32>
    %cst_61 = arith.constant 0.000000e+00 : f32
    %267 = vector.shape_cast %264 : vector<128xf32> to vector<1x128xf32>
    %268 = vector.broadcast %267 : vector<1x128xf32> to vector<8x128xf32>
    %269 = vector.broadcast %cst_61 : f32 to vector<8x128xf32>
    %270 = arith.select %266, %268, %269 : vector<8x128xi1>, vector<8x128xf32>
    %271 = arith.addf %262, %270 : vector<8x128xf32>
    %c30 = arith.constant 30 : index
    %c0_62 = arith.constant 0 : index
    %272 = vector.load %arg2[%c30, %c0_62] : memref<64x128xf32, #tpu.memory_space<vmem>>, vector<1x128xf32>
    %273 = vector.shape_cast %272 : vector<1x128xf32> to vector<128xf32>
    %c30_i32 = arith.constant 30 : i32
    %274 = vector.broadcast %c30_i32 : i32 to vector<8x128xi32>
    %275 = arith.cmpi eq, %0, %274 : vector<8x128xi32>
    %cst_63 = arith.constant 0.000000e+00 : f32
    %276 = vector.shape_cast %273 : vector<128xf32> to vector<1x128xf32>
    %277 = vector.broadcast %276 : vector<1x128xf32> to vector<8x128xf32>
    %278 = vector.broadcast %cst_63 : f32 to vector<8x128xf32>
    %279 = arith.select %275, %277, %278 : vector<8x128xi1>, vector<8x128xf32>
    %280 = arith.addf %271, %279 : vector<8x128xf32>
    %c31 = arith.constant 31 : index
    %c0_64 = arith.constant 0 : index
    %281 = vector.load %arg2[%c31, %c0_64] : memref<64x128xf32, #tpu.memory_space<vmem>>, vector<1x128xf32>
    %282 = vector.shape_cast %281 : vector<1x128xf32> to vector<128xf32>
    %c31_i32 = arith.constant 31 : i32
    %283 = vector.broadcast %c31_i32 : i32 to vector<8x128xi32>
    %284 = arith.cmpi eq, %0, %283 : vector<8x128xi32>
    %cst_65 = arith.constant 0.000000e+00 : f32
    %285 = vector.shape_cast %282 : vector<128xf32> to vector<1x128xf32>
    %286 = vector.broadcast %285 : vector<1x128xf32> to vector<8x128xf32>
    %287 = vector.broadcast %cst_65 : f32 to vector<8x128xf32>
    %288 = arith.select %284, %286, %287 : vector<8x128xi1>, vector<8x128xf32>
    %289 = arith.addf %280, %288 : vector<8x128xf32>
    %c32 = arith.constant 32 : index
    %c0_66 = arith.constant 0 : index
    %290 = vector.load %arg2[%c32, %c0_66] : memref<64x128xf32, #tpu.memory_space<vmem>>, vector<1x128xf32>
    %291 = vector.shape_cast %290 : vector<1x128xf32> to vector<128xf32>
    %c32_i32 = arith.constant 32 : i32
    %292 = vector.broadcast %c32_i32 : i32 to vector<8x128xi32>
    %293 = arith.cmpi eq, %0, %292 : vector<8x128xi32>
    %cst_67 = arith.constant 0.000000e+00 : f32
    %294 = vector.shape_cast %291 : vector<128xf32> to vector<1x128xf32>
    %295 = vector.broadcast %294 : vector<1x128xf32> to vector<8x128xf32>
    %296 = vector.broadcast %cst_67 : f32 to vector<8x128xf32>
    %297 = arith.select %293, %295, %296 : vector<8x128xi1>, vector<8x128xf32>
    %298 = arith.addf %289, %297 : vector<8x128xf32>
    %c33 = arith.constant 33 : index
    %c0_68 = arith.constant 0 : index
    %299 = vector.load %arg2[%c33, %c0_68] : memref<64x128xf32, #tpu.memory_space<vmem>>, vector<1x128xf32>
    %300 = vector.shape_cast %299 : vector<1x128xf32> to vector<128xf32>
    %c33_i32 = arith.constant 33 : i32
    %301 = vector.broadcast %c33_i32 : i32 to vector<8x128xi32>
    %302 = arith.cmpi eq, %0, %301 : vector<8x128xi32>
    %cst_69 = arith.constant 0.000000e+00 : f32
    %303 = vector.shape_cast %300 : vector<128xf32> to vector<1x128xf32>
    %304 = vector.broadcast %303 : vector<1x128xf32> to vector<8x128xf32>
    %305 = vector.broadcast %cst_69 : f32 to vector<8x128xf32>
    %306 = arith.select %302, %304, %305 : vector<8x128xi1>, vector<8x128xf32>
    %307 = arith.addf %298, %306 : vector<8x128xf32>
    %c34 = arith.constant 34 : index
    %c0_70 = arith.constant 0 : index
    %308 = vector.load %arg2[%c34, %c0_70] : memref<64x128xf32, #tpu.memory_space<vmem>>, vector<1x128xf32>
    %309 = vector.shape_cast %308 : vector<1x128xf32> to vector<128xf32>
    %c34_i32 = arith.constant 34 : i32
    %310 = vector.broadcast %c34_i32 : i32 to vector<8x128xi32>
    %311 = arith.cmpi eq, %0, %310 : vector<8x128xi32>
    %cst_71 = arith.constant 0.000000e+00 : f32
    %312 = vector.shape_cast %309 : vector<128xf32> to vector<1x128xf32>
    %313 = vector.broadcast %312 : vector<1x128xf32> to vector<8x128xf32>
    %314 = vector.broadcast %cst_71 : f32 to vector<8x128xf32>
    %315 = arith.select %311, %313, %314 : vector<8x128xi1>, vector<8x128xf32>
    %316 = arith.addf %307, %315 : vector<8x128xf32>
    %c35 = arith.constant 35 : index
    %c0_72 = arith.constant 0 : index
    %317 = vector.load %arg2[%c35, %c0_72] : memref<64x128xf32, #tpu.memory_space<vmem>>, vector<1x128xf32>
    %318 = vector.shape_cast %317 : vector<1x128xf32> to vector<128xf32>
    %c35_i32 = arith.constant 35 : i32
    %319 = vector.broadcast %c35_i32 : i32 to vector<8x128xi32>
    %320 = arith.cmpi eq, %0, %319 : vector<8x128xi32>
    %cst_73 = arith.constant 0.000000e+00 : f32
    %321 = vector.shape_cast %318 : vector<128xf32> to vector<1x128xf32>
    %322 = vector.broadcast %321 : vector<1x128xf32> to vector<8x128xf32>
    %323 = vector.broadcast %cst_73 : f32 to vector<8x128xf32>
    %324 = arith.select %320, %322, %323 : vector<8x128xi1>, vector<8x128xf32>
    %325 = arith.addf %316, %324 : vector<8x128xf32>
    %c36 = arith.constant 36 : index
    %c0_74 = arith.constant 0 : index
    %326 = vector.load %arg2[%c36, %c0_74] : memref<64x128xf32, #tpu.memory_space<vmem>>, vector<1x128xf32>
    %327 = vector.shape_cast %326 : vector<1x128xf32> to vector<128xf32>
    %c36_i32 = arith.constant 36 : i32
    %328 = vector.broadcast %c36_i32 : i32 to vector<8x128xi32>
    %329 = arith.cmpi eq, %0, %328 : vector<8x128xi32>
    %cst_75 = arith.constant 0.000000e+00 : f32
    %330 = vector.shape_cast %327 : vector<128xf32> to vector<1x128xf32>
    %331 = vector.broadcast %330 : vector<1x128xf32> to vector<8x128xf32>
    %332 = vector.broadcast %cst_75 : f32 to vector<8x128xf32>
    %333 = arith.select %329, %331, %332 : vector<8x128xi1>, vector<8x128xf32>
    %334 = arith.addf %325, %333 : vector<8x128xf32>
    %c37 = arith.constant 37 : index
    %c0_76 = arith.constant 0 : index
    %335 = vector.load %arg2[%c37, %c0_76] : memref<64x128xf32, #tpu.memory_space<vmem>>, vector<1x128xf32>
    %336 = vector.shape_cast %335 : vector<1x128xf32> to vector<128xf32>
    %c37_i32 = arith.constant 37 : i32
    %337 = vector.broadcast %c37_i32 : i32 to vector<8x128xi32>
    %338 = arith.cmpi eq, %0, %337 : vector<8x128xi32>
    %cst_77 = arith.constant 0.000000e+00 : f32
    %339 = vector.shape_cast %336 : vector<128xf32> to vector<1x128xf32>
    %340 = vector.broadcast %339 : vector<1x128xf32> to vector<8x128xf32>
    %341 = vector.broadcast %cst_77 : f32 to vector<8x128xf32>
    %342 = arith.select %338, %340, %341 : vector<8x128xi1>, vector<8x128xf32>
    %343 = arith.addf %334, %342 : vector<8x128xf32>
    %c38 = arith.constant 38 : index
    %c0_78 = arith.constant 0 : index
    %344 = vector.load %arg2[%c38, %c0_78] : memref<64x128xf32, #tpu.memory_space<vmem>>, vector<1x128xf32>
    %345 = vector.shape_cast %344 : vector<1x128xf32> to vector<128xf32>
    %c38_i32 = arith.constant 38 : i32
    %346 = vector.broadcast %c38_i32 : i32 to vector<8x128xi32>
    %347 = arith.cmpi eq, %0, %346 : vector<8x128xi32>
    %cst_79 = arith.constant 0.000000e+00 : f32
    %348 = vector.shape_cast %345 : vector<128xf32> to vector<1x128xf32>
    %349 = vector.broadcast %348 : vector<1x128xf32> to vector<8x128xf32>
    %350 = vector.broadcast %cst_79 : f32 to vector<8x128xf32>
    %351 = arith.select %347, %349, %350 : vector<8x128xi1>, vector<8x128xf32>
    %352 = arith.addf %343, %351 : vector<8x128xf32>
    %c39 = arith.constant 39 : index
    %c0_80 = arith.constant 0 : index
    %353 = vector.load %arg2[%c39, %c0_80] : memref<64x128xf32, #tpu.memory_space<vmem>>, vector<1x128xf32>
    %354 = vector.shape_cast %353 : vector<1x128xf32> to vector<128xf32>
    %c39_i32 = arith.constant 39 : i32
    %355 = vector.broadcast %c39_i32 : i32 to vector<8x128xi32>
    %356 = arith.cmpi eq, %0, %355 : vector<8x128xi32>
    %cst_81 = arith.constant 0.000000e+00 : f32
    %357 = vector.shape_cast %354 : vector<128xf32> to vector<1x128xf32>
    %358 = vector.broadcast %357 : vector<1x128xf32> to vector<8x128xf32>
    %359 = vector.broadcast %cst_81 : f32 to vector<8x128xf32>
    %360 = arith.select %356, %358, %359 : vector<8x128xi1>, vector<8x128xf32>
    %361 = arith.addf %352, %360 : vector<8x128xf32>
    %c40 = arith.constant 40 : index
    %c0_82 = arith.constant 0 : index
    %362 = vector.load %arg2[%c40, %c0_82] : memref<64x128xf32, #tpu.memory_space<vmem>>, vector<1x128xf32>
    %363 = vector.shape_cast %362 : vector<1x128xf32> to vector<128xf32>
    %c40_i32 = arith.constant 40 : i32
    %364 = vector.broadcast %c40_i32 : i32 to vector<8x128xi32>
    %365 = arith.cmpi eq, %0, %364 : vector<8x128xi32>
    %cst_83 = arith.constant 0.000000e+00 : f32
    %366 = vector.shape_cast %363 : vector<128xf32> to vector<1x128xf32>
    %367 = vector.broadcast %366 : vector<1x128xf32> to vector<8x128xf32>
    %368 = vector.broadcast %cst_83 : f32 to vector<8x128xf32>
    %369 = arith.select %365, %367, %368 : vector<8x128xi1>, vector<8x128xf32>
    %370 = arith.addf %361, %369 : vector<8x128xf32>
    %c41 = arith.constant 41 : index
    %c0_84 = arith.constant 0 : index
    %371 = vector.load %arg2[%c41, %c0_84] : memref<64x128xf32, #tpu.memory_space<vmem>>, vector<1x128xf32>
    %372 = vector.shape_cast %371 : vector<1x128xf32> to vector<128xf32>
    %c41_i32 = arith.constant 41 : i32
    %373 = vector.broadcast %c41_i32 : i32 to vector<8x128xi32>
    %374 = arith.cmpi eq, %0, %373 : vector<8x128xi32>
    %cst_85 = arith.constant 0.000000e+00 : f32
    %375 = vector.shape_cast %372 : vector<128xf32> to vector<1x128xf32>
    %376 = vector.broadcast %375 : vector<1x128xf32> to vector<8x128xf32>
    %377 = vector.broadcast %cst_85 : f32 to vector<8x128xf32>
    %378 = arith.select %374, %376, %377 : vector<8x128xi1>, vector<8x128xf32>
    %379 = arith.addf %370, %378 : vector<8x128xf32>
    %c42 = arith.constant 42 : index
    %c0_86 = arith.constant 0 : index
    %380 = vector.load %arg2[%c42, %c0_86] : memref<64x128xf32, #tpu.memory_space<vmem>>, vector<1x128xf32>
    %381 = vector.shape_cast %380 : vector<1x128xf32> to vector<128xf32>
    %c42_i32 = arith.constant 42 : i32
    %382 = vector.broadcast %c42_i32 : i32 to vector<8x128xi32>
    %383 = arith.cmpi eq, %0, %382 : vector<8x128xi32>
    %cst_87 = arith.constant 0.000000e+00 : f32
    %384 = vector.shape_cast %381 : vector<128xf32> to vector<1x128xf32>
    %385 = vector.broadcast %384 : vector<1x128xf32> to vector<8x128xf32>
    %386 = vector.broadcast %cst_87 : f32 to vector<8x128xf32>
    %387 = arith.select %383, %385, %386 : vector<8x128xi1>, vector<8x128xf32>
    %388 = arith.addf %379, %387 : vector<8x128xf32>
    %c43 = arith.constant 43 : index
    %c0_88 = arith.constant 0 : index
    %389 = vector.load %arg2[%c43, %c0_88] : memref<64x128xf32, #tpu.memory_space<vmem>>, vector<1x128xf32>
    %390 = vector.shape_cast %389 : vector<1x128xf32> to vector<128xf32>
    %c43_i32 = arith.constant 43 : i32
    %391 = vector.broadcast %c43_i32 : i32 to vector<8x128xi32>
    %392 = arith.cmpi eq, %0, %391 : vector<8x128xi32>
    %cst_89 = arith.constant 0.000000e+00 : f32
    %393 = vector.shape_cast %390 : vector<128xf32> to vector<1x128xf32>
    %394 = vector.broadcast %393 : vector<1x128xf32> to vector<8x128xf32>
    %395 = vector.broadcast %cst_89 : f32 to vector<8x128xf32>
    %396 = arith.select %392, %394, %395 : vector<8x128xi1>, vector<8x128xf32>
    %397 = arith.addf %388, %396 : vector<8x128xf32>
    %c44 = arith.constant 44 : index
    %c0_90 = arith.constant 0 : index
    %398 = vector.load %arg2[%c44, %c0_90] : memref<64x128xf32, #tpu.memory_space<vmem>>, vector<1x128xf32>
    %399 = vector.shape_cast %398 : vector<1x128xf32> to vector<128xf32>
    %c44_i32 = arith.constant 44 : i32
    %400 = vector.broadcast %c44_i32 : i32 to vector<8x128xi32>
    %401 = arith.cmpi eq, %0, %400 : vector<8x128xi32>
    %cst_91 = arith.constant 0.000000e+00 : f32
    %402 = vector.shape_cast %399 : vector<128xf32> to vector<1x128xf32>
    %403 = vector.broadcast %402 : vector<1x128xf32> to vector<8x128xf32>
    %404 = vector.broadcast %cst_91 : f32 to vector<8x128xf32>
    %405 = arith.select %401, %403, %404 : vector<8x128xi1>, vector<8x128xf32>
    %406 = arith.addf %397, %405 : vector<8x128xf32>
    %c45 = arith.constant 45 : index
    %c0_92 = arith.constant 0 : index
    %407 = vector.load %arg2[%c45, %c0_92] : memref<64x128xf32, #tpu.memory_space<vmem>>, vector<1x128xf32>
    %408 = vector.shape_cast %407 : vector<1x128xf32> to vector<128xf32>
    %c45_i32 = arith.constant 45 : i32
    %409 = vector.broadcast %c45_i32 : i32 to vector<8x128xi32>
    %410 = arith.cmpi eq, %0, %409 : vector<8x128xi32>
    %cst_93 = arith.constant 0.000000e+00 : f32
    %411 = vector.shape_cast %408 : vector<128xf32> to vector<1x128xf32>
    %412 = vector.broadcast %411 : vector<1x128xf32> to vector<8x128xf32>
    %413 = vector.broadcast %cst_93 : f32 to vector<8x128xf32>
    %414 = arith.select %410, %412, %413 : vector<8x128xi1>, vector<8x128xf32>
    %415 = arith.addf %406, %414 : vector<8x128xf32>
    %c46 = arith.constant 46 : index
    %c0_94 = arith.constant 0 : index
    %416 = vector.load %arg2[%c46, %c0_94] : memref<64x128xf32, #tpu.memory_space<vmem>>, vector<1x128xf32>
    %417 = vector.shape_cast %416 : vector<1x128xf32> to vector<128xf32>
    %c46_i32 = arith.constant 46 : i32
    %418 = vector.broadcast %c46_i32 : i32 to vector<8x128xi32>
    %419 = arith.cmpi eq, %0, %418 : vector<8x128xi32>
    %cst_95 = arith.constant 0.000000e+00 : f32
    %420 = vector.shape_cast %417 : vector<128xf32> to vector<1x128xf32>
    %421 = vector.broadcast %420 : vector<1x128xf32> to vector<8x128xf32>
    %422 = vector.broadcast %cst_95 : f32 to vector<8x128xf32>
    %423 = arith.select %419, %421, %422 : vector<8x128xi1>, vector<8x128xf32>
    %424 = arith.addf %415, %423 : vector<8x128xf32>
    %c47 = arith.constant 47 : index
    %c0_96 = arith.constant 0 : index
    %425 = vector.load %arg2[%c47, %c0_96] : memref<64x128xf32, #tpu.memory_space<vmem>>, vector<1x128xf32>
    %426 = vector.shape_cast %425 : vector<1x128xf32> to vector<128xf32>
    %c47_i32 = arith.constant 47 : i32
    %427 = vector.broadcast %c47_i32 : i32 to vector<8x128xi32>
    %428 = arith.cmpi eq, %0, %427 : vector<8x128xi32>
    %cst_97 = arith.constant 0.000000e+00 : f32
    %429 = vector.shape_cast %426 : vector<128xf32> to vector<1x128xf32>
    %430 = vector.broadcast %429 : vector<1x128xf32> to vector<8x128xf32>
    %431 = vector.broadcast %cst_97 : f32 to vector<8x128xf32>
    %432 = arith.select %428, %430, %431 : vector<8x128xi1>, vector<8x128xf32>
    %433 = arith.addf %424, %432 : vector<8x128xf32>
    %c48 = arith.constant 48 : index
    %c0_98 = arith.constant 0 : index
    %434 = vector.load %arg2[%c48, %c0_98] : memref<64x128xf32, #tpu.memory_space<vmem>>, vector<1x128xf32>
    %435 = vector.shape_cast %434 : vector<1x128xf32> to vector<128xf32>
    %c48_i32 = arith.constant 48 : i32
    %436 = vector.broadcast %c48_i32 : i32 to vector<8x128xi32>
    %437 = arith.cmpi eq, %0, %436 : vector<8x128xi32>
    %cst_99 = arith.constant 0.000000e+00 : f32
    %438 = vector.shape_cast %435 : vector<128xf32> to vector<1x128xf32>
    %439 = vector.broadcast %438 : vector<1x128xf32> to vector<8x128xf32>
    %440 = vector.broadcast %cst_99 : f32 to vector<8x128xf32>
    %441 = arith.select %437, %439, %440 : vector<8x128xi1>, vector<8x128xf32>
    %442 = arith.addf %433, %441 : vector<8x128xf32>
    %c49 = arith.constant 49 : index
    %c0_100 = arith.constant 0 : index
    %443 = vector.load %arg2[%c49, %c0_100] : memref<64x128xf32, #tpu.memory_space<vmem>>, vector<1x128xf32>
    %444 = vector.shape_cast %443 : vector<1x128xf32> to vector<128xf32>
    %c49_i32 = arith.constant 49 : i32
    %445 = vector.broadcast %c49_i32 : i32 to vector<8x128xi32>
    %446 = arith.cmpi eq, %0, %445 : vector<8x128xi32>
    %cst_101 = arith.constant 0.000000e+00 : f32
    %447 = vector.shape_cast %444 : vector<128xf32> to vector<1x128xf32>
    %448 = vector.broadcast %447 : vector<1x128xf32> to vector<8x128xf32>
    %449 = vector.broadcast %cst_101 : f32 to vector<8x128xf32>
    %450 = arith.select %446, %448, %449 : vector<8x128xi1>, vector<8x128xf32>
    %451 = arith.addf %442, %450 : vector<8x128xf32>
    %c50 = arith.constant 50 : index
    %c0_102 = arith.constant 0 : index
    %452 = vector.load %arg2[%c50, %c0_102] : memref<64x128xf32, #tpu.memory_space<vmem>>, vector<1x128xf32>
    %453 = vector.shape_cast %452 : vector<1x128xf32> to vector<128xf32>
    %c50_i32 = arith.constant 50 : i32
    %454 = vector.broadcast %c50_i32 : i32 to vector<8x128xi32>
    %455 = arith.cmpi eq, %0, %454 : vector<8x128xi32>
    %cst_103 = arith.constant 0.000000e+00 : f32
    %456 = vector.shape_cast %453 : vector<128xf32> to vector<1x128xf32>
    %457 = vector.broadcast %456 : vector<1x128xf32> to vector<8x128xf32>
    %458 = vector.broadcast %cst_103 : f32 to vector<8x128xf32>
    %459 = arith.select %455, %457, %458 : vector<8x128xi1>, vector<8x128xf32>
    %460 = arith.addf %451, %459 : vector<8x128xf32>
    %c51 = arith.constant 51 : index
    %c0_104 = arith.constant 0 : index
    %461 = vector.load %arg2[%c51, %c0_104] : memref<64x128xf32, #tpu.memory_space<vmem>>, vector<1x128xf32>
    %462 = vector.shape_cast %461 : vector<1x128xf32> to vector<128xf32>
    %c51_i32 = arith.constant 51 : i32
    %463 = vector.broadcast %c51_i32 : i32 to vector<8x128xi32>
    %464 = arith.cmpi eq, %0, %463 : vector<8x128xi32>
    %cst_105 = arith.constant 0.000000e+00 : f32
    %465 = vector.shape_cast %462 : vector<128xf32> to vector<1x128xf32>
    %466 = vector.broadcast %465 : vector<1x128xf32> to vector<8x128xf32>
    %467 = vector.broadcast %cst_105 : f32 to vector<8x128xf32>
    %468 = arith.select %464, %466, %467 : vector<8x128xi1>, vector<8x128xf32>
    %469 = arith.addf %460, %468 : vector<8x128xf32>
    %c52 = arith.constant 52 : index
    %c0_106 = arith.constant 0 : index
    %470 = vector.load %arg2[%c52, %c0_106] : memref<64x128xf32, #tpu.memory_space<vmem>>, vector<1x128xf32>
    %471 = vector.shape_cast %470 : vector<1x128xf32> to vector<128xf32>
    %c52_i32 = arith.constant 52 : i32
    %472 = vector.broadcast %c52_i32 : i32 to vector<8x128xi32>
    %473 = arith.cmpi eq, %0, %472 : vector<8x128xi32>
    %cst_107 = arith.constant 0.000000e+00 : f32
    %474 = vector.shape_cast %471 : vector<128xf32> to vector<1x128xf32>
    %475 = vector.broadcast %474 : vector<1x128xf32> to vector<8x128xf32>
    %476 = vector.broadcast %cst_107 : f32 to vector<8x128xf32>
    %477 = arith.select %473, %475, %476 : vector<8x128xi1>, vector<8x128xf32>
    %478 = arith.addf %469, %477 : vector<8x128xf32>
    %c53 = arith.constant 53 : index
    %c0_108 = arith.constant 0 : index
    %479 = vector.load %arg2[%c53, %c0_108] : memref<64x128xf32, #tpu.memory_space<vmem>>, vector<1x128xf32>
    %480 = vector.shape_cast %479 : vector<1x128xf32> to vector<128xf32>
    %c53_i32 = arith.constant 53 : i32
    %481 = vector.broadcast %c53_i32 : i32 to vector<8x128xi32>
    %482 = arith.cmpi eq, %0, %481 : vector<8x128xi32>
    %cst_109 = arith.constant 0.000000e+00 : f32
    %483 = vector.shape_cast %480 : vector<128xf32> to vector<1x128xf32>
    %484 = vector.broadcast %483 : vector<1x128xf32> to vector<8x128xf32>
    %485 = vector.broadcast %cst_109 : f32 to vector<8x128xf32>
    %486 = arith.select %482, %484, %485 : vector<8x128xi1>, vector<8x128xf32>
    %487 = arith.addf %478, %486 : vector<8x128xf32>
    %c54 = arith.constant 54 : index
    %c0_110 = arith.constant 0 : index
    %488 = vector.load %arg2[%c54, %c0_110] : memref<64x128xf32, #tpu.memory_space<vmem>>, vector<1x128xf32>
    %489 = vector.shape_cast %488 : vector<1x128xf32> to vector<128xf32>
    %c54_i32 = arith.constant 54 : i32
    %490 = vector.broadcast %c54_i32 : i32 to vector<8x128xi32>
    %491 = arith.cmpi eq, %0, %490 : vector<8x128xi32>
    %cst_111 = arith.constant 0.000000e+00 : f32
    %492 = vector.shape_cast %489 : vector<128xf32> to vector<1x128xf32>
    %493 = vector.broadcast %492 : vector<1x128xf32> to vector<8x128xf32>
    %494 = vector.broadcast %cst_111 : f32 to vector<8x128xf32>
    %495 = arith.select %491, %493, %494 : vector<8x128xi1>, vector<8x128xf32>
    %496 = arith.addf %487, %495 : vector<8x128xf32>
    %c55 = arith.constant 55 : index
    %c0_112 = arith.constant 0 : index
    %497 = vector.load %arg2[%c55, %c0_112] : memref<64x128xf32, #tpu.memory_space<vmem>>, vector<1x128xf32>
    %498 = vector.shape_cast %497 : vector<1x128xf32> to vector<128xf32>
    %c55_i32 = arith.constant 55 : i32
    %499 = vector.broadcast %c55_i32 : i32 to vector<8x128xi32>
    %500 = arith.cmpi eq, %0, %499 : vector<8x128xi32>
    %cst_113 = arith.constant 0.000000e+00 : f32
    %501 = vector.shape_cast %498 : vector<128xf32> to vector<1x128xf32>
    %502 = vector.broadcast %501 : vector<1x128xf32> to vector<8x128xf32>
    %503 = vector.broadcast %cst_113 : f32 to vector<8x128xf32>
    %504 = arith.select %500, %502, %503 : vector<8x128xi1>, vector<8x128xf32>
    %505 = arith.addf %496, %504 : vector<8x128xf32>
    %c56 = arith.constant 56 : index
    %c0_114 = arith.constant 0 : index
    %506 = vector.load %arg2[%c56, %c0_114] : memref<64x128xf32, #tpu.memory_space<vmem>>, vector<1x128xf32>
    %507 = vector.shape_cast %506 : vector<1x128xf32> to vector<128xf32>
    %c56_i32 = arith.constant 56 : i32
    %508 = vector.broadcast %c56_i32 : i32 to vector<8x128xi32>
    %509 = arith.cmpi eq, %0, %508 : vector<8x128xi32>
    %cst_115 = arith.constant 0.000000e+00 : f32
    %510 = vector.shape_cast %507 : vector<128xf32> to vector<1x128xf32>
    %511 = vector.broadcast %510 : vector<1x128xf32> to vector<8x128xf32>
    %512 = vector.broadcast %cst_115 : f32 to vector<8x128xf32>
    %513 = arith.select %509, %511, %512 : vector<8x128xi1>, vector<8x128xf32>
    %514 = arith.addf %505, %513 : vector<8x128xf32>
    %c57 = arith.constant 57 : index
    %c0_116 = arith.constant 0 : index
    %515 = vector.load %arg2[%c57, %c0_116] : memref<64x128xf32, #tpu.memory_space<vmem>>, vector<1x128xf32>
    %516 = vector.shape_cast %515 : vector<1x128xf32> to vector<128xf32>
    %c57_i32 = arith.constant 57 : i32
    %517 = vector.broadcast %c57_i32 : i32 to vector<8x128xi32>
    %518 = arith.cmpi eq, %0, %517 : vector<8x128xi32>
    %cst_117 = arith.constant 0.000000e+00 : f32
    %519 = vector.shape_cast %516 : vector<128xf32> to vector<1x128xf32>
    %520 = vector.broadcast %519 : vector<1x128xf32> to vector<8x128xf32>
    %521 = vector.broadcast %cst_117 : f32 to vector<8x128xf32>
    %522 = arith.select %518, %520, %521 : vector<8x128xi1>, vector<8x128xf32>
    %523 = arith.addf %514, %522 : vector<8x128xf32>
    %c58 = arith.constant 58 : index
    %c0_118 = arith.constant 0 : index
    %524 = vector.load %arg2[%c58, %c0_118] : memref<64x128xf32, #tpu.memory_space<vmem>>, vector<1x128xf32>
    %525 = vector.shape_cast %524 : vector<1x128xf32> to vector<128xf32>
    %c58_i32 = arith.constant 58 : i32
    %526 = vector.broadcast %c58_i32 : i32 to vector<8x128xi32>
    %527 = arith.cmpi eq, %0, %526 : vector<8x128xi32>
    %cst_119 = arith.constant 0.000000e+00 : f32
    %528 = vector.shape_cast %525 : vector<128xf32> to vector<1x128xf32>
    %529 = vector.broadcast %528 : vector<1x128xf32> to vector<8x128xf32>
    %530 = vector.broadcast %cst_119 : f32 to vector<8x128xf32>
    %531 = arith.select %527, %529, %530 : vector<8x128xi1>, vector<8x128xf32>
    %532 = arith.addf %523, %531 : vector<8x128xf32>
    %c59 = arith.constant 59 : index
    %c0_120 = arith.constant 0 : index
    %533 = vector.load %arg2[%c59, %c0_120] : memref<64x128xf32, #tpu.memory_space<vmem>>, vector<1x128xf32>
    %534 = vector.shape_cast %533 : vector<1x128xf32> to vector<128xf32>
    %c59_i32 = arith.constant 59 : i32
    %535 = vector.broadcast %c59_i32 : i32 to vector<8x128xi32>
    %536 = arith.cmpi eq, %0, %535 : vector<8x128xi32>
    %cst_121 = arith.constant 0.000000e+00 : f32
    %537 = vector.shape_cast %534 : vector<128xf32> to vector<1x128xf32>
    %538 = vector.broadcast %537 : vector<1x128xf32> to vector<8x128xf32>
    %539 = vector.broadcast %cst_121 : f32 to vector<8x128xf32>
    %540 = arith.select %536, %538, %539 : vector<8x128xi1>, vector<8x128xf32>
    %541 = arith.addf %532, %540 : vector<8x128xf32>
    %c60 = arith.constant 60 : index
    %c0_122 = arith.constant 0 : index
    %542 = vector.load %arg2[%c60, %c0_122] : memref<64x128xf32, #tpu.memory_space<vmem>>, vector<1x128xf32>
    %543 = vector.shape_cast %542 : vector<1x128xf32> to vector<128xf32>
    %c60_i32 = arith.constant 60 : i32
    %544 = vector.broadcast %c60_i32 : i32 to vector<8x128xi32>
    %545 = arith.cmpi eq, %0, %544 : vector<8x128xi32>
    %cst_123 = arith.constant 0.000000e+00 : f32
    %546 = vector.shape_cast %543 : vector<128xf32> to vector<1x128xf32>
    %547 = vector.broadcast %546 : vector<1x128xf32> to vector<8x128xf32>
    %548 = vector.broadcast %cst_123 : f32 to vector<8x128xf32>
    %549 = arith.select %545, %547, %548 : vector<8x128xi1>, vector<8x128xf32>
    %550 = arith.addf %541, %549 : vector<8x128xf32>
    %c61 = arith.constant 61 : index
    %c0_124 = arith.constant 0 : index
    %551 = vector.load %arg2[%c61, %c0_124] : memref<64x128xf32, #tpu.memory_space<vmem>>, vector<1x128xf32>
    %552 = vector.shape_cast %551 : vector<1x128xf32> to vector<128xf32>
    %c61_i32 = arith.constant 61 : i32
    %553 = vector.broadcast %c61_i32 : i32 to vector<8x128xi32>
    %554 = arith.cmpi eq, %0, %553 : vector<8x128xi32>
    %cst_125 = arith.constant 0.000000e+00 : f32
    %555 = vector.shape_cast %552 : vector<128xf32> to vector<1x128xf32>
    %556 = vector.broadcast %555 : vector<1x128xf32> to vector<8x128xf32>
    %557 = vector.broadcast %cst_125 : f32 to vector<8x128xf32>
    %558 = arith.select %554, %556, %557 : vector<8x128xi1>, vector<8x128xf32>
    %559 = arith.addf %550, %558 : vector<8x128xf32>
    %c62 = arith.constant 62 : index
    %c0_126 = arith.constant 0 : index
    %560 = vector.load %arg2[%c62, %c0_126] : memref<64x128xf32, #tpu.memory_space<vmem>>, vector<1x128xf32>
    %561 = vector.shape_cast %560 : vector<1x128xf32> to vector<128xf32>
    %c62_i32 = arith.constant 62 : i32
    %562 = vector.broadcast %c62_i32 : i32 to vector<8x128xi32>
    %563 = arith.cmpi eq, %0, %562 : vector<8x128xi32>
    %cst_127 = arith.constant 0.000000e+00 : f32
    %564 = vector.shape_cast %561 : vector<128xf32> to vector<1x128xf32>
    %565 = vector.broadcast %564 : vector<1x128xf32> to vector<8x128xf32>
    %566 = vector.broadcast %cst_127 : f32 to vector<8x128xf32>
    %567 = arith.select %563, %565, %566 : vector<8x128xi1>, vector<8x128xf32>
    %568 = arith.addf %559, %567 : vector<8x128xf32>
    %c63 = arith.constant 63 : index
    %c0_128 = arith.constant 0 : index
    %569 = vector.load %arg2[%c63, %c0_128] : memref<64x128xf32, #tpu.memory_space<vmem>>, vector<1x128xf32>
    %570 = vector.shape_cast %569 : vector<1x128xf32> to vector<128xf32>
    %c63_i32 = arith.constant 63 : i32
    %571 = vector.broadcast %c63_i32 : i32 to vector<8x128xi32>
    %572 = arith.cmpi eq, %0, %571 : vector<8x128xi32>
    %cst_129 = arith.constant 0.000000e+00 : f32
    %573 = vector.shape_cast %570 : vector<128xf32> to vector<1x128xf32>
    %574 = vector.broadcast %573 : vector<1x128xf32> to vector<8x128xf32>
    %575 = vector.broadcast %cst_129 : f32 to vector<8x128xf32>
    %576 = arith.select %572, %574, %575 : vector<8x128xi1>, vector<8x128xf32>
    %577 = arith.addf %568, %576 : vector<8x128xf32>
    %c0_130 = arith.constant 0 : index
    %c0_131 = arith.constant 0 : index
    %578 = vector.load %arg3[%c0_130, %c0_131] : memref<8x128xf32, #tpu.memory_space<vmem>>, vector<8x128xf32>
    tpu.vector_store %arg3[%c0_130, %c0_131], %577 {strides = array<i32>} : memref<8x128xf32, #tpu.memory_space<vmem>>, vector<8x128xf32>,
    return
  }
  func.func @transform_0(%arg0: i32) -> (i32, i32) {
    %c0_i32 = arith.constant 0 : i32
    %c0_i32_0 = arith.constant 0 : i32
    return %arg0, %c0_i32 : i32, i32
  }
  func.func @transform_1(%arg0: i32) -> (i32, i32) {
    %c0_i32 = arith.constant 0 : i32
    %c0_i32_0 = arith.constant 0 : i32
    %c0_i32_1 = arith.constant 0 : i32
    return %c0_i32, %c0_i32_0 : i32, i32
  }
  func.func @transform_2(%arg0: i32) -> (i32, i32) {
    %c0_i32 = arith.constant 0 : i32
    %c0_i32_0 = arith.constant 0 : i32
    return %arg0, %c0_i32 : i32, i32
  }
}

</mosaic_0001>

<llo_original>
// kernel: tpu_custom_call.1
$region0: #{tpu_custom_call.1}
  #allocation0 [shape = 'u32[]', space=smem, size = 0x4, offset = 0x4, fixed_abs, tag = 'smem constant byte address 0x4 - core index']
  #allocation1 [shape = 'u32[144,128]{1,0:T(1,128)}', space=vmem, size = 0x12000, scoped, tag = 'internal scratch']
  %s0 = inlined_call_operand.hbm [shape: s32[8,128], index: 0, kind: input, shape index: {}]
  %s1 = inlined_call_operand.hbm [shape: f32[64,128], index: 1, kind: input, shape index: {}]
  %s2 = inlined_call_operand.hbm [shape: f32[8,128], index: 2, kind: output, shape index: {}]
  %s3 = sld [smem:[#allocation0]]
  $region26: #{tpu_custom_call.1} parent=0
    _
  %s5 = ssub.s32 1, %s3
  %s6 = scalar_select 0, %s5, %s3
  $region1: #{tpu_custom_call.1} parent=0
    #allocation2 [shape = 'u8[4096]{0}', space=vmem, size = 0x1000, scoped, tag = 'input window, operand 0, single buffered']
    #allocation3 [shape = 's32[1]{0}', space=sflag, size = 0x4, scoped, tag = 'scoped memory for tpu_custom_call.1']
    #allocation4 [shape = 's32[1]{0}', space=sflag, size = 0x4, scoped, tag = 'scoped memory for tpu_custom_call.1']
    #allocation5 [shape = 'u8[32768]{0}', space=vmem, size = 0x8000, scoped, tag = 'input window, operand 1, single buffered']
    #allocation6 [shape = 's32[1]{0}', space=sflag, size = 0x4, scoped, tag = 'scoped memory for tpu_custom_call.1']
    #allocation7 [shape = 'u8[4096]{0}', space=vmem, size = 0x1000, scoped, tag = 'output window, operand 0, single buffered']
    %7 = vsyncpa [#allocation3], 0
    %8 = vsyncpa [#allocation6], 0
    %9 = vsyncpa [#allocation4], 0
    // Predicated region
    $region2: #{tpu_custom_call.1} parent=1 // pred_check
      _
    $region3: #{tpu_custom_call.1} parent=1 // pred_check_branch
      %11 = sbr.rel (0) target = $region5
    $region4: #{tpu_custom_call.1} parent=1 // pred_region
      %s13 = ssub.s32 128, 128
      %14 = vsyncadd [#allocation3], %s13
      %s16 = sshll.u32 [#allocation2], 4
      %s17 = int_to_ptr.vmem [resolvable:$true] %s16
      %19 = dma.hbm_to_vmem [thread:$0]  %s0, 128, %s17, [#allocation3]
    $region5: #{tpu_custom_call.1} parent=1 // pred_fallthru
      _
    // Predicated region
    $region6: #{tpu_custom_call.1} parent=1 // pred_check
      _
    $region7: #{tpu_custom_call.1} parent=1 // pred_check_branch
      %21 = sbr.rel (0) target = $region9
    $region8: #{tpu_custom_call.1} parent=1 // pred_region
      %s23 = ssub.s32 1024, 1024
      %24 = vsyncadd [#allocation6], %s23
      %s25 = sshll.u32 [#allocation5], 4
      %s26 = int_to_ptr.vmem [resolvable:$true] %s25
      %31 = dma.hbm_to_vmem [thread:$0]  %s1, 1024, %s26, [#allocation6], 128, 128, 8
    $region9: #{tpu_custom_call.1} parent=1 // pred_fallthru
      _
    // Predicated region
    $region10: #{tpu_custom_call.1} parent=1 // pred_check
      _
    $region11: #{tpu_custom_call.1} parent=1 // pred_check_branch
      %33 = sbr.rel (0) target = $region13
    $region12: #{tpu_custom_call.1} parent=1 // pred_region
      %34 = dma.done [#allocation3], 128
    $region13: #{tpu_custom_call.1} parent=1 // pred_fallthru
      _
    // Predicated region
    $region14: #{tpu_custom_call.1} parent=1 // pred_check
      _
    $region15: #{tpu_custom_call.1} parent=1 // pred_check_branch
      %36 = sbr.rel (0) target = $region17
    $region16: #{tpu_custom_call.1} parent=1 // pred_region
      %37 = dma.done [#allocation6], 1024
    $region17: #{tpu_custom_call.1} parent=1 // pred_fallthru
      _
    %v38 = vld [vmem:[#allocation2] sm:$0xff]
    %v39 = vld [vmem:[#allocation5] sm:$0x1]
    %vm40 = vcmp.eq.s32.totalorder %v38, 0
    %v41 = vlaneseq
    %v42 = vshrl.u32 %v41, 7
    %v43 = vsub.s32 0, %v42
    %v44 = vrot.slane %v39, %v43
    %v45 = vsel %vm40, %v44, 0.0
    %v46 = vadd.f32 %v45, 0.0
    %v47 = vld [vmem:[#allocation5 + $0x1] sm:$0x1]
    %vm48 = vcmp.eq.s32.totalorder %v38, 1
    %v49 = vlaneseq
    %v50 = vshrl.u32 %v49, 7
    %v51 = vsub.s32 0, %v50
    %v52 = vrot.slane %v47, %v51
    %v53 = vsel %vm48, %v52, 0.0
    %v54 = vadd.f32 %v46, %v53
    %v55 = vld [vmem:[#allocation5 + $0x2] sm:$0x1]
    %vm56 = vcmp.eq.s32.totalorder %v38, 2
    %v57 = vlaneseq
    %v58 = vshrl.u32 %v57, 7
    %v59 = vsub.s32 0, %v58
    %v60 = vrot.slane %v55, %v59
    %v61 = vsel %vm56, %v60, 0.0
    %v62 = vadd.f32 %v54, %v61
    %v63 = vld [vmem:[#allocation5 + $0x3] sm:$0x1]
    %vm64 = vcmp.eq.s32.totalorder %v38, 3
    %v65 = vlaneseq
    %v66 = vshrl.u32 %v65, 7
    %v67 = vsub.s32 0, %v66
    %v68 = vrot.slane %v63, %v67
    %v69 = vsel %vm64, %v68, 0.0
    %v70 = vadd.f32 %v62, %v69
    %v71 = vld [vmem:[#allocation5 + $0x4] sm:$0x1]
    %vm72 = vcmp.eq.s32.totalorder %v38, 4
    %v73 = vlaneseq
    %v74 = vshrl.u32 %v73, 7
    %v75 = vsub.s32 0, %v74
    %v76 = vrot.slane %v71, %v75
    %v77 = vsel %vm72, %v76, 0.0
    %v78 = vadd.f32 %v70, %v77
    %v79 = vld [vmem:[#allocation5 + $0x5] sm:$0x1]
    %vm80 = vcmp.eq.s32.totalorder %v38, 5
    %v81 = vlaneseq
    %v82 = vshrl.u32 %v81, 7
    %v83 = vsub.s32 0, %v82
    %v84 = vrot.slane %v79, %v83
    %v85 = vsel %vm80, %v84, 0.0
    %v86 = vadd.f32 %v78, %v85
    %v87 = vld [vmem:[#allocation5 + $0x6] sm:$0x1]
    %vm88 = vcmp.eq.s32.totalorder %v38, 6
    %v89 = vlaneseq
    %v90 = vshrl.u32 %v89, 7
    %v91 = vsub.s32 0, %v90
    %v92 = vrot.slane %v87, %v91
    %v93 = vsel %vm88, %v92, 0.0
    %v94 = vadd.f32 %v86, %v93
    %v95 = vld [vmem:[#allocation5 + $0x7] sm:$0x1]
    %vm96 = vcmp.eq.s32.totalorder %v38, 7
    %v97 = vlaneseq
    %v98 = vshrl.u32 %v97, 7
    %v99 = vsub.s32 0, %v98
    %v100 = vrot.slane %v95, %v99
    %v101 = vsel %vm96, %v100, 0.0
    %v102 = vadd.f32 %v94, %v101
    %v103 = vld [vmem:[#allocation5 + $0x8] sm:$0x1]
    %vm104 = vcmp.eq.s32.totalorder %v38, 8
    %v105 = vlaneseq
    %v106 = vshrl.u32 %v105, 7
    %v107 = vsub.s32 0, %v106
    %v108 = vrot.slane %v103, %v107
    %v109 = vsel %vm104, %v108, 0.0
    %v110 = vadd.f32 %v102, %v109
    %v111 = vld [vmem:[#allocation5 + $0x9] sm:$0x1]
    %vm112 = vcmp.eq.s32.totalorder %v38, 9
    %v113 = vlaneseq
    %v114 = vshrl.u32 %v113, 7
    %v115 = vsub.s32 0, %v114
    %v116 = vrot.slane %v111, %v115
    %v117 = vsel %vm112, %v116, 0.0
    %v118 = vadd.f32 %v110, %v117
    %v119 = vld [vmem:[#allocation5 + $0xa] sm:$0x1]
    %vm120 = vcmp.eq.s32.totalorder %v38, 10
    %v121 = vlaneseq
    %v122 = vshrl.u32 %v121, 7
    %v123 = vsub.s32 0, %v122
    %v124 = vrot.slane %v119, %v123
    %v125 = vsel %vm120, %v124, 0.0
    %v126 = vadd.f32 %v118, %v125
    %v127 = vld [vmem:[#allocation5 + $0xb] sm:$0x1]
    %vm128 = vcmp.eq.s32.totalorder %v38, 11
    %v129 = vlaneseq
    %v130 = vshrl.u32 %v129, 7
    %v131 = vsub.s32 0, %v130
    %v132 = vrot.slane %v127, %v131
    %v133 = vsel %vm128, %v132, 0.0
    %v134 = vadd.f32 %v126, %v133
    %v135 = vld [vmem:[#allocation5 + $0xc] sm:$0x1]
    %vm136 = vcmp.eq.s32.totalorder %v38, 12
    %v137 = vlaneseq
    %v138 = vshrl.u32 %v137, 7
    %v139 = vsub.s32 0, %v138
    %v140 = vrot.slane %v135, %v139
    %v141 = vsel %vm136, %v140, 0.0
    %v142 = vadd.f32 %v134, %v141
    %v143 = vld [vmem:[#allocation5 + $0xd] sm:$0x1]
    %vm144 = vcmp.eq.s32.totalorder %v38, 13
    %v145 = vlaneseq
    %v146 = vshrl.u32 %v145, 7
    %v147 = vsub.s32 0, %v146
    %v148 = vrot.slane %v143, %v147
    %v149 = vsel %vm144, %v148, 0.0
    %v150 = vadd.f32 %v142, %v149
    %v151 = vld [vmem:[#allocation5 + $0xe] sm:$0x1]
    %vm152 = vcmp.eq.s32.totalorder %v38, 14
    %v153 = vlaneseq
    %v154 = vshrl.u32 %v153, 7
    %v155 = vsub.s32 0, %v154
    %v156 = vrot.slane %v151, %v155
    %v157 = vsel %vm152, %v156, 0.0
    %v158 = vadd.f32 %v150, %v157
    %v159 = vld [vmem:[#allocation5 + $0xf] sm:$0x1]
    %vm160 = vcmp.eq.s32.totalorder %v38, 15
    %v161 = vlaneseq
    %v162 = vshrl.u32 %v161, 7
    %v163 = vsub.s32 0, %v162
    %v164 = vrot.slane %v159, %v163
    %v165 = vsel %vm160, %v164, 0.0
    %v166 = vadd.f32 %v158, %v165
    %v167 = vld [vmem:[#allocation5 + $0x10] sm:$0x1]
    %vm168 = vcmp.eq.s32.totalorder %v38, 16
    %v169 = vlaneseq
    %v170 = vshrl.u32 %v169, 7
    %v171 = vsub.s32 0, %v170
    %v172 = vrot.slane %v167, %v171
    %v173 = vsel %vm168, %v172, 0.0
    %v174 = vadd.f32 %v166, %v173
    %v175 = vld [vmem:[#allocation5 + $0x11] sm:$0x1]
    %vm176 = vcmp.eq.s32.totalorder %v38, 17
    %v177 = vlaneseq
    %v178 = vshrl.u32 %v177, 7
    %v179 = vsub.s32 0, %v178
    %v180 = vrot.slane %v175, %v179
    %v181 = vsel %vm176, %v180, 0.0
    %v182 = vadd.f32 %v174, %v181
    %v183 = vld [vmem:[#allocation5 + $0x12] sm:$0x1]
    %vm184 = vcmp.eq.s32.totalorder %v38, 18
    %v185 = vlaneseq
    %v186 = vshrl.u32 %v185, 7
    %v187 = vsub.s32 0, %v186
    %v188 = vrot.slane %v183, %v187
    %v189 = vsel %vm184, %v188, 0.0
    %v190 = vadd.f32 %v182, %v189
    %v191 = vld [vmem:[#allocation5 + $0x13] sm:$0x1]
    %vm192 = vcmp.eq.s32.totalorder %v38, 19
    %v193 = vlaneseq
    %v194 = vshrl.u32 %v193, 7
    %v195 = vsub.s32 0, %v194
    %v196 = vrot.slane %v191, %v195
    %v197 = vsel %vm192, %v196, 0.0
    %v198 = vadd.f32 %v190, %v197
    %v199 = vld [vmem:[#allocation5 + $0x14] sm:$0x1]
    %vm200 = vcmp.eq.s32.totalorder %v38, 20
    %v201 = vlaneseq
    %v202 = vshrl.u32 %v201, 7
    %v203 = vsub.s32 0, %v202
    %v204 = vrot.slane %v199, %v203
    %v205 = vsel %vm200, %v204, 0.0
    %v206 = vadd.f32 %v198, %v205
    %v207 = vld [vmem:[#allocation5 + $0x15] sm:$0x1]
    %vm208 = vcmp.eq.s32.totalorder %v38, 21
    %v209 = vlaneseq
    %v210 = vshrl.u32 %v209, 7
    %v211 = vsub.s32 0, %v210
    %v212 = vrot.slane %v207, %v211
    %v213 = vsel %vm208, %v212, 0.0
    %v214 = vadd.f32 %v206, %v213
    %v215 = vld [vmem:[#allocation5 + $0x16] sm:$0x1]
    %vm216 = vcmp.eq.s32.totalorder %v38, 22
    %v217 = vlaneseq
    %v218 = vshrl.u32 %v217, 7
    %v219 = vsub.s32 0, %v218
    %v220 = vrot.slane %v215, %v219
    %v221 = vsel %vm216, %v220, 0.0
    %v222 = vadd.f32 %v214, %v221
    %v223 = vld [vmem:[#allocation5 + $0x17] sm:$0x1]
    %vm224 = vcmp.eq.s32.totalorder %v38, 23
    %v225 = vlaneseq
    %v226 = vshrl.u32 %v225, 7
    %v227 = vsub.s32 0, %v226
    %v228 = vrot.slane %v223, %v227
    %v229 = vsel %vm224, %v228, 0.0
    %v230 = vadd.f32 %v222, %v229
    %v231 = vld [vmem:[#allocation5 + $0x18] sm:$0x1]
    %vm232 = vcmp.eq.s32.totalorder %v38, 24
    %v233 = vlaneseq
    %v234 = vshrl.u32 %v233, 7
    %v235 = vsub.s32 0, %v234
    %v236 = vrot.slane %v231, %v235
    %v237 = vsel %vm232, %v236, 0.0
    %v238 = vadd.f32 %v230, %v237
    %v239 = vld [vmem:[#allocation5 + $0x19] sm:$0x1]
    %vm240 = vcmp.eq.s32.totalorder %v38, 25
    %v241 = vlaneseq
    %v242 = vshrl.u32 %v241, 7
    %v243 = vsub.s32 0, %v242
    %v244 = vrot.slane %v239, %v243
    %v245 = vsel %vm240, %v244, 0.0
    %v246 = vadd.f32 %v238, %v245
    %v247 = vld [vmem:[#allocation5 + $0x1a] sm:$0x1]
    %vm248 = vcmp.eq.s32.totalorder %v38, 26
    %v249 = vlaneseq
    %v250 = vshrl.u32 %v249, 7
    %v251 = vsub.s32 0, %v250
    %v252 = vrot.slane %v247, %v251
    %v253 = vsel %vm248, %v252, 0.0
    %v254 = vadd.f32 %v246, %v253
    %v255 = vld [vmem:[#allocation5 + $0x1b] sm:$0x1]
    %vm256 = vcmp.eq.s32.totalorder %v38, 27
    %v257 = vlaneseq
    %v258 = vshrl.u32 %v257, 7
    %v259 = vsub.s32 0, %v258
    %v260 = vrot.slane %v255, %v259
    %v261 = vsel %vm256, %v260, 0.0
    %v262 = vadd.f32 %v254, %v261
    %v263 = vld [vmem:[#allocation5 + $0x1c] sm:$0x1]
    %vm264 = vcmp.eq.s32.totalorder %v38, 28
    %v265 = vlaneseq
    %v266 = vshrl.u32 %v265, 7
    %v267 = vsub.s32 0, %v266
    %v268 = vrot.slane %v263, %v267
    %v269 = vsel %vm264, %v268, 0.0
    %v270 = vadd.f32 %v262, %v269
    %v271 = vld [vmem:[#allocation5 + $0x1d] sm:$0x1]
    %vm272 = vcmp.eq.s32.totalorder %v38, 29
    %v273 = vlaneseq
    %v274 = vshrl.u32 %v273, 7
    %v275 = vsub.s32 0, %v274
    %v276 = vrot.slane %v271, %v275
    %v277 = vsel %vm272, %v276, 0.0
    %v278 = vadd.f32 %v270, %v277
    %v279 = vld [vmem:[#allocation5 + $0x1e] sm:$0x1]
    %vm280 = vcmp.eq.s32.totalorder %v38, 30
    %v281 = vlaneseq
    %v282 = vshrl.u32 %v281, 7
    %v283 = vsub.s32 0, %v282
    %v284 = vrot.slane %v279, %v283
    %v285 = vsel %vm280, %v284, 0.0
    %v286 = vadd.f32 %v278, %v285
    %v287 = vld [vmem:[#allocation5 + $0x1f] sm:$0x1]
    %vm288 = vcmp.eq.s32.totalorder %v38, 31
    %v289 = vlaneseq
    %v290 = vshrl.u32 %v289, 7
    %v291 = vsub.s32 0, %v290
    %v292 = vrot.slane %v287, %v291
    %v293 = vsel %vm288, %v292, 0.0
    %v294 = vadd.f32 %v286, %v293
    %v295 = vld [vmem:[#allocation5 + $0x20] sm:$0x1]
    %vm296 = vcmp.eq.s32.totalorder %v38, 32
    %v297 = vlaneseq
    %v298 = vshrl.u32 %v297, 7
    %v299 = vsub.s32 0, %v298
    %v300 = vrot.slane %v295, %v299
    %v301 = vsel %vm296, %v300, 0.0
    %v302 = vadd.f32 %v294, %v301
    %v303 = vld [vmem:[#allocation5 + $0x21] sm:$0x1]
    %vm304 = vcmp.eq.s32.totalorder %v38, 33
    %v305 = vlaneseq
    %v306 = vshrl.u32 %v305, 7
    %v307 = vsub.s32 0, %v306
    %v308 = vrot.slane %v303, %v307
    %v309 = vsel %vm304, %v308, 0.0
    %v310 = vadd.f32 %v302, %v309
    %v311 = vld [vmem:[#allocation5 + $0x22] sm:$0x1]
    %vm312 = vcmp.eq.s32.totalorder %v38, 34
    %v313 = vlaneseq
    %v314 = vshrl.u32 %v313, 7
    %v315 = vsub.s32 0, %v314
    %v316 = vrot.slane %v311, %v315
    %v317 = vsel %vm312, %v316, 0.0
    %v318 = vadd.f32 %v310, %v317
    %v319 = vld [vmem:[#allocation5 + $0x23] sm:$0x1]
    %vm320 = vcmp.eq.s32.totalorder %v38, 35
    %v321 = vlaneseq
    %v322 = vshrl.u32 %v321, 7
    %v323 = vsub.s32 0, %v322
    %v324 = vrot.slane %v319, %v323
    %v325 = vsel %vm320, %v324, 0.0
    %v326 = vadd.f32 %v318, %v325
    %v327 = vld [vmem:[#allocation5 + $0x24] sm:$0x1]
    %vm328 = vcmp.eq.s32.totalorder %v38, 36
    %v329 = vlaneseq
    %v330 = vshrl.u32 %v329, 7
    %v331 = vsub.s32 0, %v330
    %v332 = vrot.slane %v327, %v331
    %v333 = vsel %vm328, %v332, 0.0
    %v334 = vadd.f32 %v326, %v333
    %v335 = vld [vmem:[#allocation5 + $0x25] sm:$0x1]
    %vm336 = vcmp.eq.s32.totalorder %v38, 37
    %v337 = vlaneseq
    %v338 = vshrl.u32 %v337, 7
    %v339 = vsub.s32 0, %v338
    %v340 = vrot.slane %v335, %v339
    %v341 = vsel %vm336, %v340, 0.0
    %v342 = vadd.f32 %v334, %v341
    %v343 = vld [vmem:[#allocation5 + $0x26] sm:$0x1]
    %vm344 = vcmp.eq.s32.totalorder %v38, 38
    %v345 = vlaneseq
    %v346 = vshrl.u32 %v345, 7
    %v347 = vsub.s32 0, %v346
    %v348 = vrot.slane %v343, %v347
    %v349 = vsel %vm344, %v348, 0.0
    %v350 = vadd.f32 %v342, %v349
    %v351 = vld [vmem:[#allocation5 + $0x27] sm:$0x1]
    %vm352 = vcmp.eq.s32.totalorder %v38, 39
    %v353 = vlaneseq
    %v354 = vshrl.u32 %v353, 7
    %v355 = vsub.s32 0, %v354
    %v356 = vrot.slane %v351, %v355
    %v357 = vsel %vm352, %v356, 0.0
    %v358 = vadd.f32 %v350, %v357
    %v359 = vld [vmem:[#allocation5 + $0x28] sm:$0x1]
    %vm360 = vcmp.eq.s32.totalorder %v38, 40
    %v361 = vlaneseq
    %v362 = vshrl.u32 %v361, 7
    %v363 = vsub.s32 0, %v362
    %v364 = vrot.slane %v359, %v363
    %v365 = vsel %vm360, %v364, 0.0
    %v366 = vadd.f32 %v358, %v365
    %v367 = vld [vmem:[#allocation5 + $0x29] sm:$0x1]
    %vm368 = vcmp.eq.s32.totalorder %v38, 41
    %v369 = vlaneseq
    %v370 = vshrl.u32 %v369, 7
    %v371 = vsub.s32 0, %v370
    %v372 = vrot.slane %v367, %v371
    %v373 = vsel %vm368, %v372, 0.0
    %v374 = vadd.f32 %v366, %v373
    %v375 = vld [vmem:[#allocation5 + $0x2a] sm:$0x1]
    %vm376 = vcmp.eq.s32.totalorder %v38, 42
    %v377 = vlaneseq
    %v378 = vshrl.u32 %v377, 7
    %v379 = vsub.s32 0, %v378
    %v380 = vrot.slane %v375, %v379
    %v381 = vsel %vm376, %v380, 0.0
    %v382 = vadd.f32 %v374, %v381
    %v383 = vld [vmem:[#allocation5 + $0x2b] sm:$0x1]
    %vm384 = vcmp.eq.s32.totalorder %v38, 43
    %v385 = vlaneseq
    %v386 = vshrl.u32 %v385, 7
    %v387 = vsub.s32 0, %v386
    %v388 = vrot.slane %v383, %v387
    %v389 = vsel %vm384, %v388, 0.0
    %v390 = vadd.f32 %v382, %v389
    %v391 = vld [vmem:[#allocation5 + $0x2c] sm:$0x1]
    %vm392 = vcmp.eq.s32.totalorder %v38, 44
    %v393 = vlaneseq
    %v394 = vshrl.u32 %v393, 7
    %v395 = vsub.s32 0, %v394
    %v396 = vrot.slane %v391, %v395
    %v397 = vsel %vm392, %v396, 0.0
    %v398 = vadd.f32 %v390, %v397
    %v399 = vld [vmem:[#allocation5 + $0x2d] sm:$0x1]
    %vm400 = vcmp.eq.s32.totalorder %v38, 45
    %v401 = vlaneseq
    %v402 = vshrl.u32 %v401, 7
    %v403 = vsub.s32 0, %v402
    %v404 = vrot.slane %v399, %v403
    %v405 = vsel %vm400, %v404, 0.0
    %v406 = vadd.f32 %v398, %v405
    %v407 = vld [vmem:[#allocation5 + $0x2e] sm:$0x1]
    %vm408 = vcmp.eq.s32.totalorder %v38, 46
    %v409 = vlaneseq
    %v410 = vshrl.u32 %v409, 7
    %v411 = vsub.s32 0, %v410
    %v412 = vrot.slane %v407, %v411
    %v413 = vsel %vm408, %v412, 0.0
    %v414 = vadd.f32 %v406, %v413
    %v415 = vld [vmem:[#allocation5 + $0x2f] sm:$0x1]
    %vm416 = vcmp.eq.s32.totalorder %v38, 47
    %v417 = vlaneseq
    %v418 = vshrl.u32 %v417, 7
    %v419 = vsub.s32 0, %v418
    %v420 = vrot.slane %v415, %v419
    %v421 = vsel %vm416, %v420, 0.0
    %v422 = vadd.f32 %v414, %v421
    %v423 = vld [vmem:[#allocation5 + $0x30] sm:$0x1]
    %vm424 = vcmp.eq.s32.totalorder %v38, 48
    %v425 = vlaneseq
    %v426 = vshrl.u32 %v425, 7
    %v427 = vsub.s32 0, %v426
    %v428 = vrot.slane %v423, %v427
    %v429 = vsel %vm424, %v428, 0.0
    %v430 = vadd.f32 %v422, %v429
    %v431 = vld [vmem:[#allocation5 + $0x31] sm:$0x1]
    %vm432 = vcmp.eq.s32.totalorder %v38, 49
    %v433 = vlaneseq
    %v434 = vshrl.u32 %v433, 7
    %v435 = vsub.s32 0, %v434
    %v436 = vrot.slane %v431, %v435
    %v437 = vsel %vm432, %v436, 0.0
    %v438 = vadd.f32 %v430, %v437
    %v439 = vld [vmem:[#allocation5 + $0x32] sm:$0x1]
    %vm440 = vcmp.eq.s32.totalorder %v38, 50
    %v441 = vlaneseq
    %v442 = vshrl.u32 %v441, 7
    %v443 = vsub.s32 0, %v442
    %v444 = vrot.slane %v439, %v443
    %v445 = vsel %vm440, %v444, 0.0
    %v446 = vadd.f32 %v438, %v445
    %v447 = vld [vmem:[#allocation5 + $0x33] sm:$0x1]
    %vm448 = vcmp.eq.s32.totalorder %v38, 51
    %v449 = vlaneseq
    %v450 = vshrl.u32 %v449, 7
    %v451 = vsub.s32 0, %v450
    %v452 = vrot.slane %v447, %v451
    %v453 = vsel %vm448, %v452, 0.0
    %v454 = vadd.f32 %v446, %v453
    %v455 = vld [vmem:[#allocation5 + $0x34] sm:$0x1]
    %vm456 = vcmp.eq.s32.totalorder %v38, 52
    %v457 = vlaneseq
    %v458 = vshrl.u32 %v457, 7
    %v459 = vsub.s32 0, %v458
    %v460 = vrot.slane %v455, %v459
    %v461 = vsel %vm456, %v460, 0.0
    %v462 = vadd.f32 %v454, %v461
    %v463 = vld [vmem:[#allocation5 + $0x35] sm:$0x1]
    %vm464 = vcmp.eq.s32.totalorder %v38, 53
    %v465 = vlaneseq
    %v466 = vshrl.u32 %v465, 7
    %v467 = vsub.s32 0, %v466
    %v468 = vrot.slane %v463, %v467
    %v469 = vsel %vm464, %v468, 0.0
    %v470 = vadd.f32 %v462, %v469
    %v471 = vld [vmem:[#allocation5 + $0x36] sm:$0x1]
    %vm472 = vcmp.eq.s32.totalorder %v38, 54
    %v473 = vlaneseq
    %v474 = vshrl.u32 %v473, 7
    %v475 = vsub.s32 0, %v474
    %v476 = vrot.slane %v471, %v475
    %v477 = vsel %vm472, %v476, 0.0
    %v478 = vadd.f32 %v470, %v477
    %v479 = vld [vmem:[#allocation5 + $0x37] sm:$0x1]
    %vm480 = vcmp.eq.s32.totalorder %v38, 55
    %v481 = vlaneseq
    %v482 = vshrl.u32 %v481, 7
    %v483 = vsub.s32 0, %v482
    %v484 = vrot.slane %v479, %v483
    %v485 = vsel %vm480, %v484, 0.0
    %v486 = vadd.f32 %v478, %v485
    %v487 = vld [vmem:[#allocation5 + $0x38] sm:$0x1]
    %vm488 = vcmp.eq.s32.totalorder %v38, 56
    %v489 = vlaneseq
    %v490 = vshrl.u32 %v489, 7
    %v491 = vsub.s32 0, %v490
    %v492 = vrot.slane %v487, %v491
    %v493 = vsel %vm488, %v492, 0.0
    %v494 = vadd.f32 %v486, %v493
    %v495 = vld [vmem:[#allocation5 + $0x39] sm:$0x1]
    %vm496 = vcmp.eq.s32.totalorder %v38, 57
    %v497 = vlaneseq
    %v498 = vshrl.u32 %v497, 7
    %v499 = vsub.s32 0, %v498
    %v500 = vrot.slane %v495, %v499
    %v501 = vsel %vm496, %v500, 0.0
    %v502 = vadd.f32 %v494, %v501
    %v503 = vld [vmem:[#allocation5 + $0x3a] sm:$0x1]
    %vm504 = vcmp.eq.s32.totalorder %v38, 58
    %v505 = vlaneseq
    %v506 = vshrl.u32 %v505, 7
    %v507 = vsub.s32 0, %v506
    %v508 = vrot.slane %v503, %v507
    %v509 = vsel %vm504, %v508, 0.0
    %v510 = vadd.f32 %v502, %v509
    %v511 = vld [vmem:[#allocation5 + $0x3b] sm:$0x1]
    %vm512 = vcmp.eq.s32.totalorder %v38, 59
    %v513 = vlaneseq
    %v514 = vshrl.u32 %v513, 7
    %v515 = vsub.s32 0, %v514
    %v516 = vrot.slane %v511, %v515
    %v517 = vsel %vm512, %v516, 0.0
    %v518 = vadd.f32 %v510, %v517
    %v519 = vld [vmem:[#allocation5 + $0x3c] sm:$0x1]
    %vm520 = vcmp.eq.s32.totalorder %v38, 60
    %v521 = vlaneseq
    %v522 = vshrl.u32 %v521, 7
    %v523 = vsub.s32 0, %v522
    %v524 = vrot.slane %v519, %v523
    %v525 = vsel %vm520, %v524, 0.0
    %v526 = vadd.f32 %v518, %v525
    %v527 = vld [vmem:[#allocation5 + $0x3d] sm:$0x1]
    %vm528 = vcmp.eq.s32.totalorder %v38, 61
    %v529 = vlaneseq
    %v530 = vshrl.u32 %v529, 7
    %v531 = vsub.s32 0, %v530
    %v532 = vrot.slane %v527, %v531
    %v533 = vsel %vm528, %v532, 0.0
    %v534 = vadd.f32 %v526, %v533
    %v535 = vld [vmem:[#allocation5 + $0x3e] sm:$0x1]
    %vm536 = vcmp.eq.s32.totalorder %v38, 62
    %v537 = vlaneseq
    %v538 = vshrl.u32 %v537, 7
    %v539 = vsub.s32 0, %v538
    %v540 = vrot.slane %v535, %v539
    %v541 = vsel %vm536, %v540, 0.0
    %v542 = vadd.f32 %v534, %v541
    %v543 = vld [vmem:[#allocation5 + $0x3f] sm:$0x1]
    %vm544 = vcmp.eq.s32.totalorder %v38, 63
    %v545 = vlaneseq
    %v546 = vshrl.u32 %v545, 7
    %v547 = vsub.s32 0, %v546
    %v548 = vrot.slane %v543, %v547
    %v549 = vsel %vm544, %v548, 0.0
    %v550 = vadd.f32 %v542, %v549
    %551 = vst [vmem:[#allocation7] sm:$0xff] %v550
    // Predicated region
    $region18: #{tpu_custom_call.1} parent=1 // pred_check
      _
    $region19: #{tpu_custom_call.1} parent=1 // pred_check_branch
      %553 = sbr.rel (0) target = $region21
    $region20: #{tpu_custom_call.1} parent=1 // pred_region
      %s555 = ssub.s32 128, 128
      %556 = vsyncadd [#allocation4], %s555
      %s558 = sshll.u32 [#allocation7], 4
      %s559 = int_to_ptr.vmem [resolvable:$true] %s558
      %561 = dma.vmem_to_hbm [thread:$0]  %s559, 128, %s2, [#allocation4]
    $region21: #{tpu_custom_call.1} parent=1 // pred_fallthru
      _
    // Predicated region
    $region22: #{tpu_custom_call.1} parent=1 // pred_check
      _
    $region23: #{tpu_custom_call.1} parent=1 // pred_check_branch
      %563 = sbr.rel (0) target = $region25
    $region24: #{tpu_custom_call.1} parent=1 // pred_region
      %564 = dma.done [#allocation4], 128
    $region25: #{tpu_custom_call.1} parent=1 // pred_fallthru
      _
    %565 = vsyncpa [#allocation3], 1
    %566 = vsyncpa [#allocation6], 1
    %567 = vsyncpa [#allocation4], 1

</llo_original>
